<compile_context>
chip_gen: v7x
topology: tpu7x:2x2x1
jax: 0.10.0
libtpu: 0.0.40
codegen_flags: <defaults>
</compile_context>

<pallas_src>
import numpy as np
import jax
import jax.numpy as jnp
from jax.experimental import pallas as pl
from jax.experimental.pallas import tpu as pltpu

_CPAD = 8      # channel padding (one sublane tile)
_BASE = 128    # lane-aligned halo offset inside the spatial scratch


def conv3x3_same_nchw(x_nchw, w_hwio, b):
    """3x3 / stride-1 / padding-1 conv + bias on an NCHW input via one Pallas call.

    Narrow-channel kernel (Cin, Cout <= 8) -- the only conv of SimpleCNN that is
    actually reachable (the image_channels -> 3 layer).
    """
    x = jnp.asarray(x_nchw, jnp.float32)
    w = jnp.asarray(w_hwio, jnp.float32)
    b = jnp.asarray(b, jnp.float32)
    N, Cin, H, W = x.shape
    Cout = w.shape[-1]
    assert Cin <= _CPAD and Cout <= _CPAD, "narrow-channel kernel (wide layers unreachable)"
    assert W + 1 <= _BASE, "halo must cover one row shift"
    S = H * W
    assert S % _BASE == 0, "lane-batched variant needs H*W to be a multiple of 128"
    CP = _CPAD
    K = 9 * CP
    NS = N * S

    # channels -> sublanes (zero-pad to 8), spatial -> lanes.  Pure reshape, no transpose.
    x_k = jnp.pad(x.reshape(N, Cin, S), ((0, 0), (0, CP - Cin), (0, 0)))

    # weights: HWIO (3,3,Cin,Cout) -> (CP, 9*CP); column t*CP + c <-> tap t = dh*3+dw, in-channel c.
    wk = jnp.zeros((9, CP, Cout), jnp.float32).at[:, :Cin, :].set(w.reshape(9, Cin, Cout))
    w_mat = jnp.zeros((CP, K), jnp.float32).at[:Cout, :].set(wk.reshape(K, Cout).T)
    b_vec = jnp.zeros((CP, 1), jnp.float32).at[:Cout, 0].set(b)

    # Precomputed column-wrap masks (shared by all dh taps):
    #   mask_l: tap dw=-1 valid iff source col j-1 >= 0
    #   mask_r: tap dw=+1 valid iff source col j+1 <  W
    col_j = (np.arange(S, dtype=np.int32) % W)
    mask_l = jnp.broadcast_to(jnp.asarray((col_j >= 1).astype(np.float32))[None, :], (CP, S))
    mask_r = jnp.broadcast_to(jnp.asarray((col_j <= W - 2).astype(np.float32))[None, :], (CP, S))

    def kernel(x_ref, w_ref, b_ref, ml_ref, mr_ref, o_ref, xsp_ref, col_ref):
        wmat = w_ref[...]                                         # (CP, 9*CP)
        bias = b_ref[...]                                         # (CP, 1)
        m_l = ml_ref[...]                                         # (CP, S)
        m_r = mr_ref[...]                                         # (CP, S)

        xsp_ref[...] = jnp.zeros_like(xsp_ref)                    # zero the halo once

        for n in range(x_ref.shape[0]):                           # tiny static batch, one grid step
            # stage this image at a 128-lane-aligned offset inside the halo scratch
            xsp_ref[:, _BASE:_BASE + S] = x_ref[n]
            xsp = xsp_ref[...]                                    # (CP, S + 2*_BASE)

            # in-kernel im2col: row-block t, lane-block n of `col` holds the
            # (dh, dw)-shifted image.  Top/bottom out-of-bounds reads land in
            # the zeroed halo; only column wrap needs masking.
            for dh in range(3):
                for dw in range(3):
                    t = dh * 3 + dw
                    si, sj = dh - 1, dw - 1
                    s = si * W + sj
                    shifted = xsp[:, _BASE + s:_BASE + s + S]     # static lane-window slice
                    if sj == -1:
                        shifted = shifted * m_l
                    elif sj == 1:
                        shifted = shifted * m_r
                    col_ref[t * CP:(t + 1) * CP, n * S:(n + 1) * S] = shifted

        # one fused MXU contraction for the whole batch; (CP, 9*CP) @ (9*CP, N*S)
        acc = jnp.dot(wmat, col_ref[...],
                      preferred_element_type=jnp.float32,
                      precision=jax.lax.Precision.HIGHEST) + bias  # (CP, N*S)

        for n in range(x_ref.shape[0]):                            # lane-dense (S-wide) stores
            o_ref[n] = acc[:, n * S:(n + 1) * S].astype(o_ref.dtype)

    out = pl.pallas_call(
        kernel,
        out_shape=jax.ShapeDtypeStruct((N, CP, S), jnp.float32),
        grid_spec=pltpu.PrefetchScalarGridSpec(
            num_scalar_prefetch=0,
            grid=(1,),                                            # whole batch in one step
            in_specs=[
                pl.BlockSpec((N, CP, S), lambda i: (0, 0, 0)),
                pl.BlockSpec((CP, K), lambda i: (0, 0)),
                pl.BlockSpec((CP, 1), lambda i: (0, 0)),
                pl.BlockSpec((CP, S), lambda i: (0, 0)),
                pl.BlockSpec((CP, S), lambda i: (0, 0)),
            ],
            out_specs=pl.BlockSpec((N, CP, S), lambda i: (0, 0, 0)),
            scratch_shapes=[
                pltpu.VMEM((CP, S + 2 * _BASE), jnp.float32),     # lane-padded spatial halo
                pltpu.VMEM((K, NS), jnp.float32),                 # im2col patches (9*Cin_pad, N*H*W)
            ],
        ),
        compiler_params=pltpu.CompilerParams(
            dimension_semantics=("arbitrary",),
            vmem_limit_bytes=16 * 1024 * 1024,
        ),
    )(x_k, w_mat, b_vec, mask_l, mask_r)

    return out[:, :Cout, :].reshape(N, Cout, H, W)


def make_simple_cnn_params(image_channels):
    """Deterministic parameters with exactly the shapes from SimpleCNN.__init__ (HWIO)."""
    specs = ([(image_channels, 3)] * 1      # Conv2d(image_channels, 3, 3, 1, 1)
             + [(64, 64)] * 2               # Conv2d(64, 64, 3, 1, 1)
             + [(128, 128)] * 41            # Conv2d(128, 128, 3, 1, 1)
             + [(256, 256)] * 21            # Conv2d(256, 256, 3, 1, 1)
             + [(512, 512)] * 10)           # Conv2d(512, 512, 3, 1, 1)
    rng = np.random.default_rng(0)
    params = []
    for cin, cout in specs:
        bound = 1.0 / np.sqrt(cin * 9)      # PyTorch-style uniform fan-in bound
        w = rng.uniform(-bound, bound, size=(3, 3, cin, cout)).astype(np.float32)
        bb = rng.uniform(-bound, bound, size=(cout,)).astype(np.float32)
        params.append((w, bb))
    return params


def simple_cnn_forward(x_nchw, params):
    # PyTorch forward: `for encoder in self.all_encs: x = encoder(x)`.
    # As written the chain is channel-inconsistent (layer 0 outputs 3 channels,
    # layer 1 expects 64), so the torch forward itself would raise right after
    # layer 0; we apply the maximal channel-compatible prefix of the chain.
    # TODO(synk): the remaining 74 wide-channel layers are initialized but
    # unreachable as written; they would need a Cout-tiled / weight-streaming
    # variant of this kernel.
    x = jnp.asarray(x_nchw, jnp.float32)
    for w, b in params:
        if x.shape[1] != w.shape[2]:
            break
        x = conv3x3_same_nchw(x, w, b)
    return x


if __name__ == "__main__":
    image_channels = 4
    key = jax.random.PRNGKey(0)
    x = jax.random.normal(key, (2, image_channels, 16, 16), dtype=jnp.float32)

    params = make_simple_cnn_params(image_channels)

    y = simple_cnn_forward(x, params)
    y = jax.block_until_ready(y)

    # Cross-check against a pure-JAX reference for the layers actually applied.
    ref = x
    for w, b in params:
        if ref.shape[1] != w.shape[2]:
            break
        ref = jax.lax.conv_general_dilated(
            ref, jnp.transpose(jnp.asarray(w), (3, 2, 0, 1)),     # HWIO -> OIHW
            window_strides=(1, 1), padding="SAME",
            dimension_numbers=("NCHW", "OIHW", "NCHW"),
            precision=jax.lax.Precision.HIGHEST)
        ref = ref + jnp.asarray(b).reshape(1, -1, 1, 1)
    ref = jax.block_until_ready(ref)

    assert y.shape == ref.shape == (2, 3, 16, 16)
    np.testing.assert_allclose(np.asarray(y), np.asarray(ref), rtol=1e-3, atol=1e-3)
    print("KERNEL_OK")
</pallas_src>

<mosaic_0001>
module attributes {stable_mosaic.version = 11 : i64} {
  func.func @kernel(%arg0: i32, %arg1: memref<2x8x256xf32, #tpu.memory_space<vmem>>, %arg2: memref<8x72xf32, #tpu.memory_space<vmem>>, %arg3: memref<8x1xf32, #tpu.memory_space<vmem>>, %arg4: memref<8x256xf32, #tpu.memory_space<vmem>>, %arg5: memref<8x256xf32, #tpu.memory_space<vmem>>, %arg6: memref<2x8x256xf32, #tpu.memory_space<vmem>>, %arg7: memref<8x512xf32, #tpu.memory_space<vmem>>, %arg8: memref<72x512xf32, #tpu.memory_space<vmem>>) attributes {dimension_semantics = [#tpu.dimension_semantics<arbitrary>], iteration_bounds = array<i64: 1>, scalar_prefetch = 0 : i64, scratch_operands = 2 : i64, tpu.core_type = #tpu.core_type<tc>, window_params = [{pipeline_mode = #tpu.pipeline_mode<synchronous>, transform_indices = @transform_0, window_bounds = array<i64: 2, 8, 256>}, {pipeline_mode = #tpu.pipeline_mode<synchronous>, transform_indices = @transform_1, window_bounds = array<i64: 8, 72>}, {pipeline_mode = #tpu.pipeline_mode<synchronous>, transform_indices = @transform_2, window_bounds = array<i64: 8, 1>}, {pipeline_mode = #tpu.pipeline_mode<synchronous>, transform_indices = @transform_3, window_bounds = array<i64: 8, 256>}, {pipeline_mode = #tpu.pipeline_mode<synchronous>, transform_indices = @transform_4, window_bounds = array<i64: 8, 256>}, {pipeline_mode = #tpu.pipeline_mode<synchronous>, transform_indices = @transform_5, window_bounds = array<i64: 2, 8, 256>}]} {
    %c0 = arith.constant 0 : index
    %c0_0 = arith.constant 0 : index
    %0 = vector.load %arg2[%c0, %c0_0] : memref<8x72xf32, #tpu.memory_space<vmem>>, vector<8x72xf32>
    %c0_1 = arith.constant 0 : index
    %c0_2 = arith.constant 0 : index
    %1 = vector.load %arg3[%c0_1, %c0_2] : memref<8x1xf32, #tpu.memory_space<vmem>>, vector<8x1xf32>
    %c0_3 = arith.constant 0 : index
    %c0_4 = arith.constant 0 : index
    %2 = vector.load %arg4[%c0_3, %c0_4] : memref<8x256xf32, #tpu.memory_space<vmem>>, vector<8x256xf32>
    %c0_5 = arith.constant 0 : index
    %c0_6 = arith.constant 0 : index
    %3 = vector.load %arg5[%c0_5, %c0_6] : memref<8x256xf32, #tpu.memory_space<vmem>>, vector<8x256xf32>
    %cst = arith.constant 0.000000e+00 : f32
    %4 = vector.broadcast %cst : f32 to vector<8x512xf32>
    %c0_7 = arith.constant 0 : index
    %c0_8 = arith.constant 0 : index
    %5 = vector.load %arg7[%c0_7, %c0_8] : memref<8x512xf32, #tpu.memory_space<vmem>>, vector<8x512xf32>
    tpu.vector_store %arg7[%c0_7, %c0_8], %4 {strides = array<i32>} : memref<8x512xf32, #tpu.memory_space<vmem>>, vector<8x512xf32>,
    %c0_9 = arith.constant 0 : index
    %c0_10 = arith.constant 0 : index
    %c0_11 = arith.constant 0 : index
    %6 = vector.load %arg1[%c0_9, %c0_10, %c0_11] : memref<2x8x256xf32, #tpu.memory_space<vmem>>, vector<1x8x256xf32>
    %7 = vector.shape_cast %6 : vector<1x8x256xf32> to vector<8x256xf32>
    %c0_12 = arith.constant 0 : index
    %c128 = arith.constant 128 : index
    %8 = vector.load %arg7[%c0_12, %c128] : memref<8x512xf32, #tpu.memory_space<vmem>>, vector<8x256xf32>
    tpu.vector_store %arg7[%c0_12, %c128], %7 {strides = array<i32>} : memref<8x512xf32, #tpu.memory_space<vmem>>, vector<8x256xf32>,
    %c0_13 = arith.constant 0 : index
    %c0_14 = arith.constant 0 : index
    %9 = vector.load %arg7[%c0_13, %c0_14] : memref<8x512xf32, #tpu.memory_space<vmem>>, vector<8x512xf32>
    %10 = vector.extract_strided_slice %9 {offsets = [0, 111], sizes = [8, 256], strides = [1, 1]} : vector<8x512xf32> to vector<8x256xf32>
    %11 = arith.mulf %10, %2 : vector<8x256xf32>
    %c0_15 = arith.constant 0 : index
    %c0_16 = arith.constant 0 : index
    %12 = vector.load %arg8[%c0_15, %c0_16] : memref<72x512xf32, #tpu.memory_space<vmem>>, vector<8x256xf32>
    tpu.vector_store %arg8[%c0_15, %c0_16], %11 {strides = array<i32>} : memref<72x512xf32, #tpu.memory_space<vmem>>, vector<8x256xf32>,
    %13 = vector.extract_strided_slice %9 {offsets = [0, 112], sizes = [8, 256], strides = [1, 1]} : vector<8x512xf32> to vector<8x256xf32>
    %c8 = arith.constant 8 : index
    %c0_17 = arith.constant 0 : index
    %14 = vector.load %arg8[%c8, %c0_17] : memref<72x512xf32, #tpu.memory_space<vmem>>, vector<8x256xf32>
    tpu.vector_store %arg8[%c8, %c0_17], %13 {strides = array<i32>} : memref<72x512xf32, #tpu.memory_space<vmem>>, vector<8x256xf32>,
    %15 = vector.extract_strided_slice %9 {offsets = [0, 113], sizes = [8, 256], strides = [1, 1]} : vector<8x512xf32> to vector<8x256xf32>
    %16 = arith.mulf %15, %3 : vector<8x256xf32>
    %c16 = arith.constant 16 : index
    %c0_18 = arith.constant 0 : index
    %17 = vector.load %arg8[%c16, %c0_18] : memref<72x512xf32, #tpu.memory_space<vmem>>, vector<8x256xf32>
    tpu.vector_store %arg8[%c16, %c0_18], %16 {strides = array<i32>} : memref<72x512xf32, #tpu.memory_space<vmem>>, vector<8x256xf32>,
    %18 = vector.extract_strided_slice %9 {offsets = [0, 127], sizes = [8, 256], strides = [1, 1]} : vector<8x512xf32> to vector<8x256xf32>
    %19 = arith.mulf %18, %2 : vector<8x256xf32>
    %c24 = arith.constant 24 : index
    %c0_19 = arith.constant 0 : index
    %20 = vector.load %arg8[%c24, %c0_19] : memref<72x512xf32, #tpu.memory_space<vmem>>, vector<8x256xf32>
    tpu.vector_store %arg8[%c24, %c0_19], %19 {strides = array<i32>} : memref<72x512xf32, #tpu.memory_space<vmem>>, vector<8x256xf32>,
    %21 = vector.extract_strided_slice %9 {offsets = [0, 128], sizes = [8, 256], strides = [1, 1]} : vector<8x512xf32> to vector<8x256xf32>
    %c32 = arith.constant 32 : index
    %c0_20 = arith.constant 0 : index
    %22 = vector.load %arg8[%c32, %c0_20] : memref<72x512xf32, #tpu.memory_space<vmem>>, vector<8x256xf32>
    tpu.vector_store %arg8[%c32, %c0_20], %21 {strides = array<i32>} : memref<72x512xf32, #tpu.memory_space<vmem>>, vector<8x256xf32>,
    %23 = vector.extract_strided_slice %9 {offsets = [0, 129], sizes = [8, 256], strides = [1, 1]} : vector<8x512xf32> to vector<8x256xf32>
    %24 = arith.mulf %23, %3 : vector<8x256xf32>
    %c40 = arith.constant 40 : index
    %c0_21 = arith.constant 0 : index
    %25 = vector.load %arg8[%c40, %c0_21] : memref<72x512xf32, #tpu.memory_space<vmem>>, vector<8x256xf32>
    tpu.vector_store %arg8[%c40, %c0_21], %24 {strides = array<i32>} : memref<72x512xf32, #tpu.memory_space<vmem>>, vector<8x256xf32>,
    %26 = vector.extract_strided_slice %9 {offsets = [0, 143], sizes = [8, 256], strides = [1, 1]} : vector<8x512xf32> to vector<8x256xf32>
    %27 = arith.mulf %26, %2 : vector<8x256xf32>
    %c48 = arith.constant 48 : index
    %c0_22 = arith.constant 0 : index
    %28 = vector.load %arg8[%c48, %c0_22] : memref<72x512xf32, #tpu.memory_space<vmem>>, vector<8x256xf32>
    tpu.vector_store %arg8[%c48, %c0_22], %27 {strides = array<i32>} : memref<72x512xf32, #tpu.memory_space<vmem>>, vector<8x256xf32>,
    %29 = vector.extract_strided_slice %9 {offsets = [0, 144], sizes = [8, 256], strides = [1, 1]} : vector<8x512xf32> to vector<8x256xf32>
    %c56 = arith.constant 56 : index
    %c0_23 = arith.constant 0 : index
    %30 = vector.load %arg8[%c56, %c0_23] : memref<72x512xf32, #tpu.memory_space<vmem>>, vector<8x256xf32>
    tpu.vector_store %arg8[%c56, %c0_23], %29 {strides = array<i32>} : memref<72x512xf32, #tpu.memory_space<vmem>>, vector<8x256xf32>,
    %31 = vector.extract_strided_slice %9 {offsets = [0, 145], sizes = [8, 256], strides = [1, 1]} : vector<8x512xf32> to vector<8x256xf32>
    %32 = arith.mulf %31, %3 : vector<8x256xf32>
    %c64 = arith.constant 64 : index
    %c0_24 = arith.constant 0 : index
    %33 = vector.load %arg8[%c64, %c0_24] : memref<72x512xf32, #tpu.memory_space<vmem>>, vector<8x256xf32>
    tpu.vector_store %arg8[%c64, %c0_24], %32 {strides = array<i32>} : memref<72x512xf32, #tpu.memory_space<vmem>>, vector<8x256xf32>,
    %c1 = arith.constant 1 : index
    %c0_25 = arith.constant 0 : index
    %c0_26 = arith.constant 0 : index
    %34 = vector.load %arg1[%c1, %c0_25, %c0_26] : memref<2x8x256xf32, #tpu.memory_space<vmem>>, vector<1x8x256xf32>
    %35 = vector.shape_cast %34 : vector<1x8x256xf32> to vector<8x256xf32>
    %c0_27 = arith.constant 0 : index
    %c128_28 = arith.constant 128 : index
    %36 = vector.load %arg7[%c0_27, %c128_28] : memref<8x512xf32, #tpu.memory_space<vmem>>, vector<8x256xf32>
    tpu.vector_store %arg7[%c0_27, %c128_28], %35 {strides = array<i32>} : memref<8x512xf32, #tpu.memory_space<vmem>>, vector<8x256xf32>,
    %c0_29 = arith.constant 0 : index
    %c0_30 = arith.constant 0 : index
    %37 = vector.load %arg7[%c0_29, %c0_30] : memref<8x512xf32, #tpu.memory_space<vmem>>, vector<8x512xf32>
    %38 = vector.extract_strided_slice %37 {offsets = [0, 111], sizes = [8, 256], strides = [1, 1]} : vector<8x512xf32> to vector<8x256xf32>
    %39 = arith.mulf %38, %2 : vector<8x256xf32>
    %c0_31 = arith.constant 0 : index
    %c256 = arith.constant 256 : index
    %40 = vector.load %arg8[%c0_31, %c256] : memref<72x512xf32, #tpu.memory_space<vmem>>, vector<8x256xf32>
    tpu.vector_store %arg8[%c0_31, %c256], %39 {strides = array<i32>} : memref<72x512xf32, #tpu.memory_space<vmem>>, vector<8x256xf32>,
    %41 = vector.extract_strided_slice %37 {offsets = [0, 112], sizes = [8, 256], strides = [1, 1]} : vector<8x512xf32> to vector<8x256xf32>
    %c8_32 = arith.constant 8 : index
    %c256_33 = arith.constant 256 : index
    %42 = vector.load %arg8[%c8_32, %c256_33] : memref<72x512xf32, #tpu.memory_space<vmem>>, vector<8x256xf32>
    tpu.vector_store %arg8[%c8_32, %c256_33], %41 {strides = array<i32>} : memref<72x512xf32, #tpu.memory_space<vmem>>, vector<8x256xf32>,
    %43 = vector.extract_strided_slice %37 {offsets = [0, 113], sizes = [8, 256], strides = [1, 1]} : vector<8x512xf32> to vector<8x256xf32>
    %44 = arith.mulf %43, %3 : vector<8x256xf32>
    %c16_34 = arith.constant 16 : index
    %c256_35 = arith.constant 256 : index
    %45 = vector.load %arg8[%c16_34, %c256_35] : memref<72x512xf32, #tpu.memory_space<vmem>>, vector<8x256xf32>
    tpu.vector_store %arg8[%c16_34, %c256_35], %44 {strides = array<i32>} : memref<72x512xf32, #tpu.memory_space<vmem>>, vector<8x256xf32>,
    %46 = vector.extract_strided_slice %37 {offsets = [0, 127], sizes = [8, 256], strides = [1, 1]} : vector<8x512xf32> to vector<8x256xf32>
    %47 = arith.mulf %46, %2 : vector<8x256xf32>
    %c24_36 = arith.constant 24 : index
    %c256_37 = arith.constant 256 : index
    %48 = vector.load %arg8[%c24_36, %c256_37] : memref<72x512xf32, #tpu.memory_space<vmem>>, vector<8x256xf32>
    tpu.vector_store %arg8[%c24_36, %c256_37], %47 {strides = array<i32>} : memref<72x512xf32, #tpu.memory_space<vmem>>, vector<8x256xf32>,
    %49 = vector.extract_strided_slice %37 {offsets = [0, 128], sizes = [8, 256], strides = [1, 1]} : vector<8x512xf32> to vector<8x256xf32>
    %c32_38 = arith.constant 32 : index
    %c256_39 = arith.constant 256 : index
    %50 = vector.load %arg8[%c32_38, %c256_39] : memref<72x512xf32, #tpu.memory_space<vmem>>, vector<8x256xf32>
    tpu.vector_store %arg8[%c32_38, %c256_39], %49 {strides = array<i32>} : memref<72x512xf32, #tpu.memory_space<vmem>>, vector<8x256xf32>,
    %51 = vector.extract_strided_slice %37 {offsets = [0, 129], sizes = [8, 256], strides = [1, 1]} : vector<8x512xf32> to vector<8x256xf32>
    %52 = arith.mulf %51, %3 : vector<8x256xf32>
    %c40_40 = arith.constant 40 : index
    %c256_41 = arith.constant 256 : index
    %53 = vector.load %arg8[%c40_40, %c256_41] : memref<72x512xf32, #tpu.memory_space<vmem>>, vector<8x256xf32>
    tpu.vector_store %arg8[%c40_40, %c256_41], %52 {strides = array<i32>} : memref<72x512xf32, #tpu.memory_space<vmem>>, vector<8x256xf32>,
    %54 = vector.extract_strided_slice %37 {offsets = [0, 143], sizes = [8, 256], strides = [1, 1]} : vector<8x512xf32> to vector<8x256xf32>
    %55 = arith.mulf %54, %2 : vector<8x256xf32>
    %c48_42 = arith.constant 48 : index
    %c256_43 = arith.constant 256 : index
    %56 = vector.load %arg8[%c48_42, %c256_43] : memref<72x512xf32, #tpu.memory_space<vmem>>, vector<8x256xf32>
    tpu.vector_store %arg8[%c48_42, %c256_43], %55 {strides = array<i32>} : memref<72x512xf32, #tpu.memory_space<vmem>>, vector<8x256xf32>,
    %57 = vector.extract_strided_slice %37 {offsets = [0, 144], sizes = [8, 256], strides = [1, 1]} : vector<8x512xf32> to vector<8x256xf32>
    %c56_44 = arith.constant 56 : index
    %c256_45 = arith.constant 256 : index
    %58 = vector.load %arg8[%c56_44, %c256_45] : memref<72x512xf32, #tpu.memory_space<vmem>>, vector<8x256xf32>
    tpu.vector_store %arg8[%c56_44, %c256_45], %57 {strides = array<i32>} : memref<72x512xf32, #tpu.memory_space<vmem>>, vector<8x256xf32>,
    %59 = vector.extract_strided_slice %37 {offsets = [0, 145], sizes = [8, 256], strides = [1, 1]} : vector<8x512xf32> to vector<8x256xf32>
    %60 = arith.mulf %59, %3 : vector<8x256xf32>
    %c64_46 = arith.constant 64 : index
    %c256_47 = arith.constant 256 : index
    %61 = vector.load %arg8[%c64_46, %c256_47] : memref<72x512xf32, #tpu.memory_space<vmem>>, vector<8x256xf32>
    tpu.vector_store %arg8[%c64_46, %c256_47], %60 {strides = array<i32>} : memref<72x512xf32, #tpu.memory_space<vmem>>, vector<8x256xf32>,
    %c0_48 = arith.constant 0 : index
    %c0_49 = arith.constant 0 : index
    %62 = vector.load %arg8[%c0_48, %c0_49] : memref<72x512xf32, #tpu.memory_space<vmem>>, vector<72x512xf32>
    %cst_50 = arith.constant dense<0.000000e+00> : vector<8x512xf32>
    %63 = tpu.matmul %0, %62, %cst_50 {dimension_numbers = #tpu.dot_dimension_numbers<[1], [0], [0], [1], [0, 0, 1, 1], [], []>, precision = #tpu.contract_precision<fp32>} : vector<8x72xf32>, vector<72x512xf32>, vector<8x512xf32> -> vector<8x512xf32>
    %64 = vector.broadcast %1 : vector<8x1xf32> to vector<8x512xf32>
    %65 = arith.addf %63, %64 : vector<8x512xf32>
    %66 = vector.extract_strided_slice %65 {offsets = [0, 0], sizes = [8, 256], strides = [1, 1]} : vector<8x512xf32> to vector<8x256xf32>
    %c0_51 = arith.constant 0 : index
    %c0_52 = arith.constant 0 : index
    %c0_53 = arith.constant 0 : index
    %67 = vector.load %arg6[%c0_51, %c0_52, %c0_53] : memref<2x8x256xf32, #tpu.memory_space<vmem>>, vector<1x8x256xf32>
    %68 = vector.shape_cast %67 : vector<1x8x256xf32> to vector<8x256xf32>
    %69 = vector.shape_cast %66 : vector<8x256xf32> to vector<1x8x256xf32>
    tpu.vector_store %arg6[%c0_51, %c0_52, %c0_53], %69 {strides = array<i32>} : memref<2x8x256xf32, #tpu.memory_space<vmem>>, vector<1x8x256xf32>,
    %70 = vector.extract_strided_slice %65 {offsets = [0, 256], sizes = [8, 256], strides = [1, 1]} : vector<8x512xf32> to vector<8x256xf32>
    %c1_54 = arith.constant 1 : index
    %c0_55 = arith.constant 0 : index
    %c0_56 = arith.constant 0 : index
    %71 = vector.load %arg6[%c1_54, %c0_55, %c0_56] : memref<2x8x256xf32, #tpu.memory_space<vmem>>, vector<1x8x256xf32>
    %72 = vector.shape_cast %71 : vector<1x8x256xf32> to vector<8x256xf32>
    %73 = vector.shape_cast %70 : vector<8x256xf32> to vector<1x8x256xf32>
    tpu.vector_store %arg6[%c1_54, %c0_55, %c0_56], %73 {strides = array<i32>} : memref<2x8x256xf32, #tpu.memory_space<vmem>>, vector<1x8x256xf32>,
    return
  }
  func.func @transform_0(%arg0: i32) -> (i32, i32, i32) {
    %c0_i32 = arith.constant 0 : i32
    %c0_i32_0 = arith.constant 0 : i32
    %c0_i32_1 = arith.constant 0 : i32
    %c0_i32_2 = arith.constant 0 : i32
    return %c0_i32, %c0_i32_0, %c0_i32_1 : i32, i32, i32
  }
  func.func @transform_1(%arg0: i32) -> (i32, i32) {
    %c0_i32 = arith.constant 0 : i32
    %c0_i32_0 = arith.constant 0 : i32
    %c0_i32_1 = arith.constant 0 : i32
    return %c0_i32, %c0_i32_0 : i32, i32
  }
  func.func @transform_2(%arg0: i32) -> (i32, i32) {
    %c0_i32 = arith.constant 0 : i32
    %c0_i32_0 = arith.constant 0 : i32
    %c0_i32_1 = arith.constant 0 : i32
    return %c0_i32, %c0_i32_0 : i32, i32
  }
  func.func @transform_3(%arg0: i32) -> (i32, i32) {
    %c0_i32 = arith.constant 0 : i32
    %c0_i32_0 = arith.constant 0 : i32
    %c0_i32_1 = arith.constant 0 : i32
    return %c0_i32, %c0_i32_0 : i32, i32
  }
  func.func @transform_4(%arg0: i32) -> (i32, i32) {
    %c0_i32 = arith.constant 0 : i32
    %c0_i32_0 = arith.constant 0 : i32
    %c0_i32_1 = arith.constant 0 : i32
    return %c0_i32, %c0_i32_0 : i32, i32
  }
  func.func @transform_5(%arg0: i32) -> (i32, i32, i32) {
    %c0_i32 = arith.constant 0 : i32
    %c0_i32_0 = arith.constant 0 : i32
    %c0_i32_1 = arith.constant 0 : i32
    %c0_i32_2 = arith.constant 0 : i32
    return %c0_i32, %c0_i32_0, %c0_i32_1 : i32, i32, i32
  }
}

</mosaic_0001>

<llo_original>
// kernel: tpu_custom_call.1
$region0: #{tpu_custom_call.1}
  #allocation0 [shape = 'u32[]', space=smem, size = 0x4, offset = 0x4, fixed_abs, tag = 'smem constant byte address 0x4 - core index']
  #allocation1 [shape = 'u32[144,128]{1,0:T(1,128)}', space=vmem, size = 0x12000, scoped, tag = 'internal scratch']
  #allocation2 [shape = 'f32[8,512]{1,0:T(8,128)}', space=vmem, size = 0x4000, scoped, tag = 'scratch operand']
  #allocation3 [shape = 'f32[72,512]{1,0:T(8,128)}', space=vmem, size = 0x24000, scoped, tag = 'scratch operand']
  %s0 = inlined_call_operand.hbm [shape: f32[2,8,256], index: 0, kind: input, shape index: {}]
  %s1 = inlined_call_operand.hbm [shape: f32[8,72], index: 1, kind: input, shape index: {}]
  %s2 = inlined_call_operand.vmem [shape: f32[8,1], index: 2, kind: input, shape index: {}]
  %s3 = inlined_call_operand.vmem [shape: f32[8,256], index: 3, kind: input, shape index: {}]
  %s4 = inlined_call_operand.hbm [shape: f32[8,256], index: 4, kind: input, shape index: {}]
  %s5 = inlined_call_operand.hbm [shape: f32[2,8,256], index: 5, kind: output, shape index: {}]
  %s6 = sld [smem:[#allocation0]]
  $region42: #{tpu_custom_call.1} parent=0
    _
  %s8 = ssub.s32 1, %s6
  %s9 = scalar_select 0, %s8, %s6
  $region1: #{tpu_custom_call.1} parent=0
    #allocation4 [shape = 'u8[16384]{0}', space=vmem, size = 0x4000, scoped, tag = 'input window, operand 0, single buffered']
    #allocation5 [shape = 's32[1]{0}', space=sflag, size = 0x4, scoped, tag = 'scoped memory for tpu_custom_call.1']
    #allocation6 [shape = 's32[1]{0}', space=sflag, size = 0x4, scoped, tag = 'scoped memory for tpu_custom_call.1']
    #allocation7 [shape = 'u8[4096]{0}', space=vmem, size = 0x1000, scoped, tag = 'input window, operand 1, single buffered']
    #allocation8 [shape = 's32[1]{0}', space=sflag, size = 0x4, scoped, tag = 'scoped memory for tpu_custom_call.1']
    #allocation9 [shape = 'u8[8192]{0}', space=vmem, size = 0x2000, scoped, tag = 'input window, operand 4, single buffered']
    #allocation10 [shape = 'u8[16384]{0}', space=vmem, size = 0x4000, scoped, tag = 'output window, operand 0, single buffered']
    %10 = vsyncpa [#allocation5], 0
    %11 = vsyncpa [#allocation8], 0
    %12 = vsyncpa [#allocation6], 0
    // Predicated region
    $region2: #{tpu_custom_call.1} parent=1 // pred_check
      _
    $region3: #{tpu_custom_call.1} parent=1 // pred_check_branch
      %14 = sbr.rel (0) target = $region5
    $region4: #{tpu_custom_call.1} parent=1 // pred_region
      %s16 = ssub.s32 512, 512
      %17 = vsyncadd [#allocation5], %s16
      %s18 = sshll.u32 [#allocation4], 4
      %s19 = int_to_ptr.vmem [resolvable:$true] %s18
      %24 = dma.hbm_to_vmem [thread:$0]  %s0, 512, %s19, [#allocation5], 256, 256, 16
    $region5: #{tpu_custom_call.1} parent=1 // pred_fallthru
      _
    // Predicated region
    $region6: #{tpu_custom_call.1} parent=1 // pred_check
      _
    $region7: #{tpu_custom_call.1} parent=1 // pred_check_branch
      %26 = sbr.rel (0) target = $region9
    $region8: #{tpu_custom_call.1} parent=1 // pred_region
      %s28 = ssub.s32 128, 128
      %29 = vsyncadd [#allocation8], %s28
      %s31 = sshll.u32 [#allocation7], 4
      %s32 = int_to_ptr.vmem [resolvable:$true] %s31
      %34 = dma.hbm_to_vmem [thread:$0]  %s1, 128, %s32, [#allocation8]
    $region9: #{tpu_custom_call.1} parent=1 // pred_fallthru
      _
    // Predicated region
    $region10: #{tpu_custom_call.1} parent=1 // pred_check
      _
    $region11: #{tpu_custom_call.1} parent=1 // pred_check_branch
      %36 = sbr.rel (0) target = $region13
    $region12: #{tpu_custom_call.1} parent=1 // pred_region
      _
    $region13: #{tpu_custom_call.1} parent=1 // pred_fallthru
      _
    // Predicated region
    $region14: #{tpu_custom_call.1} parent=1 // pred_check
      _
    $region15: #{tpu_custom_call.1} parent=1 // pred_check_branch
      %38 = sbr.rel (0) target = $region17
    $region16: #{tpu_custom_call.1} parent=1 // pred_region
      _
    $region17: #{tpu_custom_call.1} parent=1 // pred_fallthru
      _
    // Predicated region
    $region18: #{tpu_custom_call.1} parent=1 // pred_check
      _
    $region19: #{tpu_custom_call.1} parent=1 // pred_check_branch
      %40 = sbr.rel (0) target = $region21
    $region20: #{tpu_custom_call.1} parent=1 // pred_region
      %s42 = ssub.s32 256, 256
      %43 = vsyncadd [#allocation8], %s42
      %s45 = sshll.u32 [#allocation9], 4
      %s46 = int_to_ptr.vmem [resolvable:$true] %s45
      %48 = dma.hbm_to_vmem [thread:$0]  %s4, 256, %s46, [#allocation8]
    $region21: #{tpu_custom_call.1} parent=1 // pred_fallthru
      _
    // Predicated region
    $region22: #{tpu_custom_call.1} parent=1 // pred_check
      _
    $region23: #{tpu_custom_call.1} parent=1 // pred_check_branch
      %50 = sbr.rel (0) target = $region25
    $region24: #{tpu_custom_call.1} parent=1 // pred_region
      %51 = dma.done [#allocation5], 512
    $region25: #{tpu_custom_call.1} parent=1 // pred_fallthru
      _
    // Predicated region
    $region26: #{tpu_custom_call.1} parent=1 // pred_check
      _
    $region27: #{tpu_custom_call.1} parent=1 // pred_check_branch
      %53 = sbr.rel (0) target = $region29
    $region28: #{tpu_custom_call.1} parent=1 // pred_region
      %54 = dma.done [#allocation8], 128
    $region29: #{tpu_custom_call.1} parent=1 // pred_fallthru
      _
    // Predicated region
    $region30: #{tpu_custom_call.1} parent=1 // pred_check
      _
    $region31: #{tpu_custom_call.1} parent=1 // pred_check_branch
      %56 = sbr.rel (0) target = $region33
    $region32: #{tpu_custom_call.1} parent=1 // pred_region
      %57 = dma.done [#allocation8], 256
    $region33: #{tpu_custom_call.1} parent=1 // pred_fallthru
      _
    %v58 = vld [vmem:[#allocation7] sm:$0xff]
    %v59 = vld [vmem:[%s2] sm:$0xff]
    %v60 = vld [vmem:[%s3] sm:$0xff]
    %v61 = vld [vmem:[%s3 + $0x8] sm:$0xff]
    %v62 = vld [vmem:[#allocation9] sm:$0xff]
    %v63 = vld [vmem:[#allocation9 + $0x8] sm:$0xff]
    %64 = vst [vmem:[#allocation2] sm:$0xff] 0.0
    %65 = vst [vmem:[#allocation2 + $0x8] sm:$0xff] 0.0
    %66 = vst [vmem:[#allocation2 + $0x10] sm:$0xff] 0.0
    %67 = vst [vmem:[#allocation2 + $0x18] sm:$0xff] 0.0
    %v68 = vld [vmem:[#allocation4] sm:$0xff]
    %v69 = vld [vmem:[#allocation4 + $0x8] sm:$0xff]
    %70 = vst [vmem:[#allocation2 + $0x8] sm:$0xff] %v68
    %71 = vst [vmem:[#allocation2 + $0x10] sm:$0xff] %v69
    %v72 = vld [vmem:[#allocation2] sm:$0xff]
    %v73 = vld [vmem:[#allocation2 + $0x8] sm:$0xff]
    %v74 = vld [vmem:[#allocation2 + $0x10] sm:$0xff]
    %v75 = vld [vmem:[#allocation2 + $0x18] sm:$0xff]
    %78 = vrot.lane.b32.xlu0 %v60, 111
    %v79 = vpop.permute.xlu0 %78
    %80 = vrot.lane.b32.xlu0 %v61, 111
    %v81 = vpop.permute.xlu0 %80
    %vm82 = vcmask 908288
    %v83 = vsel %vm82, %v79, %v81
    %v87 = vmul.f32 %v72, %v79
    %v88 = vmul.f32 %v73, %v83
    %v89 = vmul.f32 %v74, %v81
    %93 = vrot.lane.b32.xlu0 %v87, 17
    %v94 = vpop.permute.xlu0 %93
    %95 = vrot.lane.b32.xlu0 %v88, 17
    %v96 = vpop.permute.xlu0 %95
    %97 = vrot.lane.b32.xlu0 %v89, 17
    %v98 = vpop.permute.xlu0 %97
    %vm99 = vcmask 138240
    %v100 = vsel %vm99, %v94, %v96
    %v101 = vsel %vm99, %v96, %v98
    %104 = vst [vmem:[#allocation3] sm:$0xff] %v100
    %105 = vst [vmem:[#allocation3 + $0x8] sm:$0xff] %v101
    %109 = vrot.lane.b32.xlu0 %v72, 16
    %v110 = vpop.permute.xlu0 %109
    %111 = vrot.lane.b32.xlu0 %v73, 16
    %v112 = vpop.permute.xlu0 %111
    %113 = vrot.lane.b32.xlu0 %v74, 16
    %v114 = vpop.permute.xlu0 %113
    %vm115 = vcmask 130048
    %v116 = vsel %vm115, %v110, %v112
    %v117 = vsel %vm115, %v112, %v114
    %120 = vst [vmem:[#allocation3 + $0x20] sm:$0xff] %v116
    %121 = vst [vmem:[#allocation3 + $0x28] sm:$0xff] %v117
    %124 = vrot.lane.b32.xlu0 %v62, 113
    %v125 = vpop.permute.xlu0 %124
    %126 = vrot.lane.b32.xlu0 %v63, 113
    %v127 = vpop.permute.xlu0 %126
    %vm128 = vcmask 924672
    %v129 = vsel %vm128, %v125, %v127
    %v133 = vmul.f32 %v72, %v125
    %v134 = vmul.f32 %v73, %v129
    %v135 = vmul.f32 %v74, %v127
    %139 = vrot.lane.b32.xlu0 %v133, 15
    %v140 = vpop.permute.xlu0 %139
    %141 = vrot.lane.b32.xlu0 %v134, 15
    %v142 = vpop.permute.xlu0 %141
    %143 = vrot.lane.b32.xlu0 %v135, 15
    %v144 = vpop.permute.xlu0 %143
    %vm145 = vcmask 121856
    %v146 = vsel %vm145, %v140, %v142
    %v147 = vsel %vm145, %v142, %v144
    %150 = vst [vmem:[#allocation3 + $0x40] sm:$0xff] %v146
    %151 = vst [vmem:[#allocation3 + $0x48] sm:$0xff] %v147
    %152 = vrot.lane.b32.xlu0 %v60, 127
    %v153 = vpop.permute.xlu0 %152
    %154 = vrot.lane.b32.xlu0 %v61, 127
    %v155 = vpop.permute.xlu0 %154
    %vm156 = vcmask 1039360
    %v157 = vsel %vm156, %v153, %v155
    %v161 = vmul.f32 %v72, %v153
    %v162 = vmul.f32 %v73, %v157
    %v163 = vmul.f32 %v74, %v155
    %167 = vrot.lane.b32.xlu0 %v161, 1
    %v168 = vpop.permute.xlu0 %167
    %169 = vrot.lane.b32.xlu0 %v162, 1
    %v170 = vpop.permute.xlu0 %169
    %171 = vrot.lane.b32.xlu0 %v163, 1
    %v172 = vpop.permute.xlu0 %171
    %vm173 = vcmask 7168
    %v174 = vsel %vm173, %v168, %v170
    %v175 = vsel %vm173, %v170, %v172
    %178 = vst [vmem:[#allocation3 + $0x60] sm:$0xff] %v174
    %179 = vst [vmem:[#allocation3 + $0x68] sm:$0xff] %v175
    %180 = vst [vmem:[#allocation3 + $0x80] sm:$0xff] %v73
    %181 = vst [vmem:[#allocation3 + $0x88] sm:$0xff] %v74
    %182 = vrot.lane.b32.xlu0 %v62, 1
    %v183 = vpop.permute.xlu0 %182
    %184 = vrot.lane.b32.xlu0 %v63, 1
    %v185 = vpop.permute.xlu0 %184
    %v186 = vsel %vm173, %v183, %v185
    %v190 = vmul.f32 %v73, %v183
    %v191 = vmul.f32 %v74, %v186
    %v192 = vmul.f32 %v75, %v185
    %196 = vrot.lane.b32.xlu0 %v190, 127
    %v197 = vpop.permute.xlu0 %196
    %198 = vrot.lane.b32.xlu0 %v191, 127
    %v199 = vpop.permute.xlu0 %198
    %200 = vrot.lane.b32.xlu0 %v192, 127
    %v201 = vpop.permute.xlu0 %200
    %v202 = vsel %vm156, %v197, %v199
    %v203 = vsel %vm156, %v199, %v201
    %206 = vst [vmem:[#allocation3 + $0xa0] sm:$0xff] %v202
    %207 = vst [vmem:[#allocation3 + $0xa8] sm:$0xff] %v203
    %208 = vrot.lane.b32.xlu0 %v60, 15
    %v209 = vpop.permute.xlu0 %208
    %210 = vrot.lane.b32.xlu0 %v61, 15
    %v211 = vpop.permute.xlu0 %210
    %v212 = vsel %vm145, %v209, %v211
    %v216 = vmul.f32 %v73, %v209
    %v217 = vmul.f32 %v74, %v212
    %v218 = vmul.f32 %v75, %v211
    %222 = vrot.lane.b32.xlu0 %v216, 113
    %v223 = vpop.permute.xlu0 %222
    %224 = vrot.lane.b32.xlu0 %v217, 113
    %v225 = vpop.permute.xlu0 %224
    %226 = vrot.lane.b32.xlu0 %v218, 113
    %v227 = vpop.permute.xlu0 %226
    %v228 = vsel %vm128, %v223, %v225
    %v229 = vsel %vm128, %v225, %v227
    %232 = vst [vmem:[#allocation3 + $0xc0] sm:$0xff] %v228
    %233 = vst [vmem:[#allocation3 + $0xc8] sm:$0xff] %v229
    %235 = vrot.lane.b32.xlu0 %v73, 112
    %v236 = vpop.permute.xlu0 %235
    %237 = vrot.lane.b32.xlu0 %v74, 112
    %v238 = vpop.permute.xlu0 %237
    %239 = vrot.lane.b32.xlu0 %v75, 112
    %v240 = vpop.permute.xlu0 %239
    %vm241 = vcmask 916480
    %v242 = vsel %vm241, %v236, %v238
    %v243 = vsel %vm241, %v238, %v240
    %246 = vst [vmem:[#allocation3 + $0xe0] sm:$0xff] %v242
    %247 = vst [vmem:[#allocation3 + $0xe8] sm:$0xff] %v243
    %248 = vrot.lane.b32.xlu0 %v62, 17
    %v249 = vpop.permute.xlu0 %248
    %250 = vrot.lane.b32.xlu0 %v63, 17
    %v251 = vpop.permute.xlu0 %250
    %v252 = vsel %vm99, %v249, %v251
    %v256 = vmul.f32 %v73, %v249
    %v257 = vmul.f32 %v74, %v252
    %v258 = vmul.f32 %v75, %v251
    %262 = vrot.lane.b32.xlu0 %v256, 111
    %v263 = vpop.permute.xlu0 %262
    %264 = vrot.lane.b32.xlu0 %v257, 111
    %v265 = vpop.permute.xlu0 %264
    %266 = vrot.lane.b32.xlu0 %v258, 111
    %v267 = vpop.permute.xlu0 %266
    %v268 = vsel %vm82, %v263, %v265
    %v269 = vsel %vm82, %v265, %v267
    %272 = vst [vmem:[#allocation3 + $0x100] sm:$0xff] %v268
    %273 = vst [vmem:[#allocation3 + $0x108] sm:$0xff] %v269
    %s274 = scalar_lea.vmem [#allocation4], 16
    %v275 = vld [vmem:[%s274] sm:$0xff]
    %v276 = vld [vmem:[%s274 + $0x8] sm:$0xff]
    %277 = vst [vmem:[#allocation2 + $0x8] sm:$0xff] %v275
    %278 = vst [vmem:[#allocation2 + $0x10] sm:$0xff] %v276
    %v279 = vld [vmem:[#allocation2] sm:$0xff]
    %v280 = vld [vmem:[#allocation2 + $0x8] sm:$0xff]
    %v281 = vld [vmem:[#allocation2 + $0x10] sm:$0xff]
    %v282 = vld [vmem:[#allocation2 + $0x18] sm:$0xff]
    %v283 = vmul.f32 %v279, %v79
    %v284 = vmul.f32 %v280, %v83
    %v285 = vmul.f32 %v281, %v81
    %289 = vrot.lane.b32.xlu0 %v283, 17
    %v290 = vpop.permute.xlu0 %289
    %291 = vrot.lane.b32.xlu0 %v284, 17
    %v292 = vpop.permute.xlu0 %291
    %293 = vrot.lane.b32.xlu0 %v285, 17
    %v294 = vpop.permute.xlu0 %293
    %v295 = vsel %vm99, %v290, %v292
    %v296 = vsel %vm99, %v292, %v294
    %299 = vst [vmem:[#allocation3 + $0x10] sm:$0xff] %v295
    %300 = vst [vmem:[#allocation3 + $0x18] sm:$0xff] %v296
    %304 = vrot.lane.b32.xlu0 %v279, 16
    %v305 = vpop.permute.xlu0 %304
    %306 = vrot.lane.b32.xlu0 %v280, 16
    %v307 = vpop.permute.xlu0 %306
    %308 = vrot.lane.b32.xlu0 %v281, 16
    %v309 = vpop.permute.xlu0 %308
    %v310 = vsel %vm115, %v305, %v307
    %v311 = vsel %vm115, %v307, %v309
    %314 = vst [vmem:[#allocation3 + $0x30] sm:$0xff] %v310
    %315 = vst [vmem:[#allocation3 + $0x38] sm:$0xff] %v311
    %v316 = vmul.f32 %v279, %v125
    %v317 = vmul.f32 %v280, %v129
    %v318 = vmul.f32 %v281, %v127
    %322 = vrot.lane.b32.xlu0 %v316, 15
    %v323 = vpop.permute.xlu0 %322
    %324 = vrot.lane.b32.xlu0 %v317, 15
    %v325 = vpop.permute.xlu0 %324
    %326 = vrot.lane.b32.xlu0 %v318, 15
    %v327 = vpop.permute.xlu0 %326
    %v328 = vsel %vm145, %v323, %v325
    %v329 = vsel %vm145, %v325, %v327
    %332 = vst [vmem:[#allocation3 + $0x50] sm:$0xff] %v328
    %333 = vst [vmem:[#allocation3 + $0x58] sm:$0xff] %v329
    %v334 = vmul.f32 %v279, %v153
    %v335 = vmul.f32 %v280, %v157
    %v336 = vmul.f32 %v281, %v155
    %340 = vrot.lane.b32.xlu0 %v334, 1
    %v341 = vpop.permute.xlu0 %340
    %342 = vrot.lane.b32.xlu0 %v335, 1
    %v343 = vpop.permute.xlu0 %342
    %344 = vrot.lane.b32.xlu0 %v336, 1
    %v345 = vpop.permute.xlu0 %344
    %v346 = vsel %vm173, %v341, %v343
    %v347 = vsel %vm173, %v343, %v345
    %350 = vst [vmem:[#allocation3 + $0x70] sm:$0xff] %v346
    %351 = vst [vmem:[#allocation3 + $0x78] sm:$0xff] %v347
    %352 = vst [vmem:[#allocation3 + $0x90] sm:$0xff] %v280
    %353 = vst [vmem:[#allocation3 + $0x98] sm:$0xff] %v281
    %v354 = vmul.f32 %v280, %v183
    %v355 = vmul.f32 %v281, %v186
    %v356 = vmul.f32 %v282, %v185
    %360 = vrot.lane.b32.xlu0 %v354, 127
    %v361 = vpop.permute.xlu0 %360
    %362 = vrot.lane.b32.xlu0 %v355, 127
    %v363 = vpop.permute.xlu0 %362
    %364 = vrot.lane.b32.xlu0 %v356, 127
    %v365 = vpop.permute.xlu0 %364
    %v366 = vsel %vm156, %v361, %v363
    %v367 = vsel %vm156, %v363, %v365
    %370 = vst [vmem:[#allocation3 + $0xb0] sm:$0xff] %v366
    %371 = vst [vmem:[#allocation3 + $0xb8] sm:$0xff] %v367
    %v372 = vmul.f32 %v280, %v209
    %v373 = vmul.f32 %v281, %v212
    %v374 = vmul.f32 %v282, %v211
    %378 = vrot.lane.b32.xlu0 %v372, 113
    %v379 = vpop.permute.xlu0 %378
    %380 = vrot.lane.b32.xlu0 %v373, 113
    %v381 = vpop.permute.xlu0 %380
    %382 = vrot.lane.b32.xlu0 %v374, 113
    %v383 = vpop.permute.xlu0 %382
    %v384 = vsel %vm128, %v379, %v381
    %v385 = vsel %vm128, %v381, %v383
    %388 = vst [vmem:[#allocation3 + $0xd0] sm:$0xff] %v384
    %389 = vst [vmem:[#allocation3 + $0xd8] sm:$0xff] %v385
    %391 = vrot.lane.b32.xlu0 %v280, 112
    %v392 = vpop.permute.xlu0 %391
    %393 = vrot.lane.b32.xlu0 %v281, 112
    %v394 = vpop.permute.xlu0 %393
    %395 = vrot.lane.b32.xlu0 %v282, 112
    %v396 = vpop.permute.xlu0 %395
    %v397 = vsel %vm241, %v392, %v394
    %v398 = vsel %vm241, %v394, %v396
    %401 = vst [vmem:[#allocation3 + $0xf0] sm:$0xff] %v397
    %402 = vst [vmem:[#allocation3 + $0xf8] sm:$0xff] %v398
    %v403 = vmul.f32 %v280, %v249
    %v404 = vmul.f32 %v281, %v252
    %v405 = vmul.f32 %v282, %v251
    %409 = vrot.lane.b32.xlu0 %v403, 111
    %v410 = vpop.permute.xlu0 %409
    %411 = vrot.lane.b32.xlu0 %v404, 111
    %v412 = vpop.permute.xlu0 %411
    %413 = vrot.lane.b32.xlu0 %v405, 111
    %v414 = vpop.permute.xlu0 %413
    %v415 = vsel %vm82, %v410, %v412
    %v416 = vsel %vm82, %v412, %v414
    %419 = vst [vmem:[#allocation3 + $0x110] sm:$0xff] %v415
    %420 = vst [vmem:[#allocation3 + $0x118] sm:$0xff] %v416
    %v421 = vld [vmem:[#allocation3] sm:$0xff]
    %v422 = vld [vmem:[#allocation3 + $0x8] sm:$0xff]
    %v423 = vld [vmem:[#allocation3 + $0x10] sm:$0xff]
    %v424 = vld [vmem:[#allocation3 + $0x18] sm:$0xff]
    %v425 = vld [vmem:[#allocation3 + $0x20] sm:$0xff]
    %v426 = vld [vmem:[#allocation3 + $0x28] sm:$0xff]
    %v427 = vld [vmem:[#allocation3 + $0x30] sm:$0xff]
    %v428 = vld [vmem:[#allocation3 + $0x38] sm:$0xff]
    %v429 = vld [vmem:[#allocation3 + $0x40] sm:$0xff]
    %v430 = vld [vmem:[#allocation3 + $0x48] sm:$0xff]
    %v431 = vld [vmem:[#allocation3 + $0x50] sm:$0xff]
    %v432 = vld [vmem:[#allocation3 + $0x58] sm:$0xff]
    %v433 = vld [vmem:[#allocation3 + $0x60] sm:$0xff]
    %v434 = vld [vmem:[#allocation3 + $0x68] sm:$0xff]
    %v435 = vld [vmem:[#allocation3 + $0x70] sm:$0xff]
    %v436 = vld [vmem:[#allocation3 + $0x78] sm:$0xff]
    %v437 = vld [vmem:[#allocation3 + $0x80] sm:$0xff]
    %v438 = vld [vmem:[#allocation3 + $0x88] sm:$0xff]
    %v439 = vld [vmem:[#allocation3 + $0x90] sm:$0xff]
    %v440 = vld [vmem:[#allocation3 + $0x98] sm:$0xff]
    %v441 = vld [vmem:[#allocation3 + $0xa0] sm:$0xff]
    %v442 = vld [vmem:[#allocation3 + $0xa8] sm:$0xff]
    %v443 = vld [vmem:[#allocation3 + $0xb0] sm:$0xff]
    %v444 = vld [vmem:[#allocation3 + $0xb8] sm:$0xff]
    %v445 = vld [vmem:[#allocation3 + $0xc0] sm:$0xff]
    %v446 = vld [vmem:[#allocation3 + $0xc8] sm:$0xff]
    %v447 = vld [vmem:[#allocation3 + $0xd0] sm:$0xff]
    %v448 = vld [vmem:[#allocation3 + $0xd8] sm:$0xff]
    %v449 = vld [vmem:[#allocation3 + $0xe0] sm:$0xff]
    %v450 = vld [vmem:[#allocation3 + $0xe8] sm:$0xff]
    %v451 = vld [vmem:[#allocation3 + $0xf0] sm:$0xff]
    %v452 = vld [vmem:[#allocation3 + $0xf8] sm:$0xff]
    %v453 = vld [vmem:[#allocation3 + $0x100] sm:$0xff]
    %v454 = vld [vmem:[#allocation3 + $0x108] sm:$0xff]
    %v455 = vld [vmem:[#allocation3 + $0x110] sm:$0xff]
    %v456 = vld [vmem:[#allocation3 + $0x118] sm:$0xff]
    %458 = vset.pattern.permute.xlu0 0
    %459 = vperm.xlu0 %458, %v59
    %v460 = vpop.permute.xlu0 %459
    %vm462 = vcmask 588800
    %v464 = vsel %vm462, %v58, 0
    %v466 = vand.u32 %v422, 4294901760
    %467 = vmatprep.subr.mxu0 %v466
    %v468 = vand.u32 %v421, 4294901760
    %469 = vmatpush1.msra.mxu0 %v468
    %v470 = vand.u32 %v426, 4294901760
    %471 = vmatprep.subr.mxu0 %v470
    %v472 = vand.u32 %v425, 4294901760
    %473 = vmatpush1.msra.mxu0 %v472
    %v474 = vand.u32 %v430, 4294901760
    %475 = vmatprep.subr.mxu0 %v474
    %v476 = vand.u32 %v429, 4294901760
    %477 = vmatpush1.msra.mxu0 %v476
    %v478 = vand.u32 %v434, 4294901760
    %479 = vmatprep.subr.mxu0 %v478
    %v480 = vand.u32 %v433, 4294901760
    %481 = vmatpush1.msra.mxu0 %v480
    %v482 = vand.u32 %v438, 4294901760
    %483 = vmatprep.subr.mxu0 %v482
    %v484 = vand.u32 %v437, 4294901760
    %485 = vmatpush1.msra.mxu0 %v484
    %v486 = vand.u32 %v442, 4294901760
    %487 = vmatprep.subr.mxu0 %v486
    %v488 = vand.u32 %v441, 4294901760
    %489 = vmatpush1.msra.mxu0 %v488
    %v490 = vand.u32 %v446, 4294901760
    %491 = vmatprep.subr.mxu0 %v490
    %v492 = vand.u32 %v445, 4294901760
    %493 = vmatpush1.msra.mxu0 %v492
    %v494 = vand.u32 %v450, 4294901760
    %495 = vmatprep.subr.mxu0 %v494
    %v496 = vand.u32 %v449, 4294901760
    %497 = vmatpush1.msra.mxu0 %v496
    %v498 = vand.u32 %v454, 4294901760
    %499 = vmatprep.subr.mxu0 %v498
    %v500 = vand.u32 %v453, 4294901760
    %501 = vmatpush1.msra.mxu0 %v500
    %502 = vmatprep.subr.mxu0 0.0
    %503 = vmatpush1.msra.mxu0 0.0
    %504 = vmatprep.subr.mxu0 0.0
    %505 = vmatpush1.msra.mxu0 0.0
    %506 = vmatprep.subr.mxu0 0.0
    %507 = vmatpush1.msra.mxu0 0.0
    %508 = vmatprep.subr.mxu0 0.0
    %509 = vmatpush1.msra.mxu0 0.0
    %510 = vmatprep.subr.mxu0 0.0
    %511 = vmatpush1.msra.mxu0 0.0
    %512 = vmatprep.subr.mxu0 0.0
    %513 = vmatpush1.msra.mxu0 0.0
    %514 = vmatprep.subr.mxu0 0.0
    %515 = vmatpush1.msra.mxu0 0.0
    %516 = vmatprep.subr.mxu0 0.0
    %517 = vmatpush1.msra.mxu0 0.0
    %518 = vmatprep.subr.mxu0 0.0
    %519 = vmatpush1.msra.mxu0 0.0
    %520 = vmatprep.subr.mxu0 0.0
    %521 = vmatpush1.msra.mxu0 0.0
    %522 = vmatprep.subr.mxu0 0.0
    %523 = vmatpush1.msra.mxu0 0.0
    %524 = vmatprep.subr.mxu0 0.0
    %525 = vmatpush1.msra.mxu0 0.0
    %526 = vmatprep.subr.mxu0 0.0
    %527 = vmatpush1.msra.mxu0 0.0
    %528 = vmatprep.subr.mxu0 0.0
    %529 = vmatpush1.msra.mxu0 0.0
    %530 = vmatprep.subr.mxu0 0.0
    %531 = vmatpush1.msra.mxu0 0.0
    %532 = vmatprep.subr.mxu0 0.0
    %533 = vmatpush1.msra.mxu0 0.0
    %534 = vmatprep.subr.mxu0 0.0
    %535 = vmatpush1.msra.mxu0 0.0
    %536 = vmatprep.subr.mxu0 0.0
    %537 = vmatpush1.msra.mxu0 0.0
    %538 = vmatprep.subr.mxu0 0.0
    %539 = vmatpush1.msra.mxu0 0.0
    %540 = vmatprep.subr.mxu0 0.0
    %541 = vmatpush1.msra.mxu0 0.0
    %542 = vmatprep.subr.mxu0 0.0
    %543 = vmatpush1.msra.mxu0 0.0
    %544 = vmatprep.subr.mxu0 0.0
    %545 = vmatpush1.msra.mxu0 0.0
    %546 = vmatprep.subr.mxu0 0.0
    %547 = vmatpush1.msra.mxu0 0.0
    %548 = vmatprep.mubr.f32.mxu0 0.0
    %v549 = vand.u32 %v464, 4294901760
    %v550 = vsub.f32 %v464, %v549
    %v551 = vand.u32 %v550, 4294901760
    %v552 = vsub.f32 %v550, %v551
    %v553 = vand.u32 %v552, 4294901760
    %554 = vmatmul.mubr.f32.gmra.mrb[0].mxu0 %v553
    %v555 = vpop.f32.mrb[0].mxu0
    %v556 = vadd.f32 %v460, %v555
    %v557 = vpop.f32.mrb[0].mxu0
    %v558 = vadd.f32 %v460, %v557
    %559 = vdwg.mxu0
    %v560 = vand.u32 %v422, 4294901760
    %v561 = vsub.f32 %v422, %v560
    %v562 = vand.u32 %v561, 4294901760
    %v563 = vsub.f32 %v561, %v562
    %v564 = vand.u32 %v563, 4294901760
    %565 = vmatprep.subr.mxu0 %v564
    %v566 = vand.u32 %v421, 4294901760
    %v567 = vsub.f32 %v421, %v566
    %v568 = vand.u32 %v567, 4294901760
    %v569 = vsub.f32 %v567, %v568
    %v570 = vand.u32 %v569, 4294901760
    %571 = vmatpush1.msra.mxu0 %v570
    %v572 = vand.u32 %v426, 4294901760
    %v573 = vsub.f32 %v426, %v572
    %v574 = vand.u32 %v573, 4294901760
    %v575 = vsub.f32 %v573, %v574
    %v576 = vand.u32 %v575, 4294901760
    %577 = vmatprep.subr.mxu0 %v576
    %v578 = vand.u32 %v425, 4294901760
    %v579 = vsub.f32 %v425, %v578
    %v580 = vand.u32 %v579, 4294901760
    %v581 = vsub.f32 %v579, %v580
    %v582 = vand.u32 %v581, 4294901760
    %583 = vmatpush1.msra.mxu0 %v582
    %v584 = vand.u32 %v430, 4294901760
    %v585 = vsub.f32 %v430, %v584
    %v586 = vand.u32 %v585, 4294901760
    %v587 = vsub.f32 %v585, %v586
    %v588 = vand.u32 %v587, 4294901760
    %589 = vmatprep.subr.mxu0 %v588
    %v590 = vand.u32 %v429, 4294901760
    %v591 = vsub.f32 %v429, %v590
    %v592 = vand.u32 %v591, 4294901760
    %v593 = vsub.f32 %v591, %v592
    %v594 = vand.u32 %v593, 4294901760
    %595 = vmatpush1.msra.mxu0 %v594
    %v596 = vand.u32 %v434, 4294901760
    %v597 = vsub.f32 %v434, %v596
    %v598 = vand.u32 %v597, 4294901760
    %v599 = vsub.f32 %v597, %v598
    %v600 = vand.u32 %v599, 4294901760
    %601 = vmatprep.subr.mxu0 %v600
    %v602 = vand.u32 %v433, 4294901760
    %v603 = vsub.f32 %v433, %v602
    %v604 = vand.u32 %v603, 4294901760
    %v605 = vsub.f32 %v603, %v604
    %v606 = vand.u32 %v605, 4294901760
    %607 = vmatpush1.msra.mxu0 %v606
    %v608 = vand.u32 %v438, 4294901760
    %v609 = vsub.f32 %v438, %v608
    %v610 = vand.u32 %v609, 4294901760
    %v611 = vsub.f32 %v609, %v610
    %v612 = vand.u32 %v611, 4294901760
    %613 = vmatprep.subr.mxu0 %v612
    %v614 = vand.u32 %v437, 4294901760
    %v615 = vsub.f32 %v437, %v614
    %v616 = vand.u32 %v615, 4294901760
    %v617 = vsub.f32 %v615, %v616
    %v618 = vand.u32 %v617, 4294901760
    %619 = vmatpush1.msra.mxu0 %v618
    %v620 = vand.u32 %v442, 4294901760
    %v621 = vsub.f32 %v442, %v620
    %v622 = vand.u32 %v621, 4294901760
    %v623 = vsub.f32 %v621, %v622
    %v624 = vand.u32 %v623, 4294901760
    %625 = vmatprep.subr.mxu0 %v624
    %v626 = vand.u32 %v441, 4294901760
    %v627 = vsub.f32 %v441, %v626
    %v628 = vand.u32 %v627, 4294901760
    %v629 = vsub.f32 %v627, %v628
    %v630 = vand.u32 %v629, 4294901760
    %631 = vmatpush1.msra.mxu0 %v630
    %v632 = vand.u32 %v446, 4294901760
    %v633 = vsub.f32 %v446, %v632
    %v634 = vand.u32 %v633, 4294901760
    %v635 = vsub.f32 %v633, %v634
    %v636 = vand.u32 %v635, 4294901760
    %637 = vmatprep.subr.mxu0 %v636
    %v638 = vand.u32 %v445, 4294901760
    %v639 = vsub.f32 %v445, %v638
    %v640 = vand.u32 %v639, 4294901760
    %v641 = vsub.f32 %v639, %v640
    %v642 = vand.u32 %v641, 4294901760
    %643 = vmatpush1.msra.mxu0 %v642
    %v644 = vand.u32 %v450, 4294901760
    %v645 = vsub.f32 %v450, %v644
    %v646 = vand.u32 %v645, 4294901760
    %v647 = vsub.f32 %v645, %v646
    %v648 = vand.u32 %v647, 4294901760
    %649 = vmatprep.subr.mxu0 %v648
    %v650 = vand.u32 %v449, 4294901760
    %v651 = vsub.f32 %v449, %v650
    %v652 = vand.u32 %v651, 4294901760
    %v653 = vsub.f32 %v651, %v652
    %v654 = vand.u32 %v653, 4294901760
    %655 = vmatpush1.msra.mxu0 %v654
    %v656 = vand.u32 %v454, 4294901760
    %v657 = vsub.f32 %v454, %v656
    %v658 = vand.u32 %v657, 4294901760
    %v659 = vsub.f32 %v657, %v658
    %v660 = vand.u32 %v659, 4294901760
    %661 = vmatprep.subr.mxu0 %v660
    %v662 = vand.u32 %v453, 4294901760
    %v663 = vsub.f32 %v453, %v662
    %v664 = vand.u32 %v663, 4294901760
    %v665 = vsub.f32 %v663, %v664
    %v666 = vand.u32 %v665, 4294901760
    %667 = vmatpush1.msra.mxu0 %v666
    %668 = vmatprep.subr.mxu0 0.0
    %669 = vmatpush1.msra.mxu0 0.0
    %670 = vmatprep.subr.mxu0 0.0
    %671 = vmatpush1.msra.mxu0 0.0
    %672 = vmatprep.subr.mxu0 0.0
    %673 = vmatpush1.msra.mxu0 0.0
    %674 = vmatprep.subr.mxu0 0.0
    %675 = vmatpush1.msra.mxu0 0.0
    %676 = vmatprep.subr.mxu0 0.0
    %677 = vmatpush1.msra.mxu0 0.0
    %678 = vmatprep.subr.mxu0 0.0
    %679 = vmatpush1.msra.mxu0 0.0
    %680 = vmatprep.subr.mxu0 0.0
    %681 = vmatpush1.msra.mxu0 0.0
    %682 = vmatprep.subr.mxu0 0.0
    %683 = vmatpush1.msra.mxu0 0.0
    %684 = vmatprep.subr.mxu0 0.0
    %685 = vmatpush1.msra.mxu0 0.0
    %686 = vmatprep.subr.mxu0 0.0
    %687 = vmatpush1.msra.mxu0 0.0
    %688 = vmatprep.subr.mxu0 0.0
    %689 = vmatpush1.msra.mxu0 0.0
    %690 = vmatprep.subr.mxu0 0.0
    %691 = vmatpush1.msra.mxu0 0.0
    %692 = vmatprep.subr.mxu0 0.0
    %693 = vmatpush1.msra.mxu0 0.0
    %694 = vmatprep.subr.mxu0 0.0
    %695 = vmatpush1.msra.mxu0 0.0
    %696 = vmatprep.subr.mxu0 0.0
    %697 = vmatpush1.msra.mxu0 0.0
    %698 = vmatprep.subr.mxu0 0.0
    %699 = vmatpush1.msra.mxu0 0.0
    %700 = vmatprep.subr.mxu0 0.0
    %701 = vmatpush1.msra.mxu0 0.0
    %702 = vmatprep.subr.mxu0 0.0
    %703 = vmatpush1.msra.mxu0 0.0
    %704 = vmatprep.subr.mxu0 0.0
    %705 = vmatpush1.msra.mxu0 0.0
    %706 = vmatprep.subr.mxu0 0.0
    %707 = vmatpush1.msra.mxu0 0.0
    %708 = vmatprep.subr.mxu0 0.0
    %709 = vmatpush1.msra.mxu0 0.0
    %710 = vmatprep.subr.mxu0 0.0
    %711 = vmatpush1.msra.mxu0 0.0
    %712 = vmatprep.subr.mxu0 0.0
    %713 = vmatpush1.msra.mxu0 0.0
    %714 = vmatprep.mubr.f32.mxu0 0.0
    %v715 = vand.u32 %v464, 4294901760
    %716 = vmatmul.mubr.f32.gmra.mrb[0].mxu0 %v715
    %v717 = vpop.f32.mrb[0].mxu0
    %v718 = vadd.f32 %v556, %v717
    %v719 = vpop.f32.mrb[0].mxu0
    %v720 = vadd.f32 %v558, %v719
    %721 = vdwg.mxu0
    %v722 = vand.u32 %v422, 4294901760
    %v723 = vsub.f32 %v422, %v722
    %724 = vmatprep.subr.mxu0 %v723
    %v725 = vand.u32 %v421, 4294901760
    %v726 = vsub.f32 %v421, %v725
    %727 = vmatpush1.msra.mxu0 %v726
    %v728 = vand.u32 %v426, 4294901760
    %v729 = vsub.f32 %v426, %v728
    %730 = vmatprep.subr.mxu0 %v729
    %v731 = vand.u32 %v425, 4294901760
    %v732 = vsub.f32 %v425, %v731
    %733 = vmatpush1.msra.mxu0 %v732
    %v734 = vand.u32 %v430, 4294901760
    %v735 = vsub.f32 %v430, %v734
    %736 = vmatprep.subr.mxu0 %v735
    %v737 = vand.u32 %v429, 4294901760
    %v738 = vsub.f32 %v429, %v737
    %739 = vmatpush1.msra.mxu0 %v738
    %v740 = vand.u32 %v434, 4294901760
    %v741 = vsub.f32 %v434, %v740
    %742 = vmatprep.subr.mxu0 %v741
    %v743 = vand.u32 %v433, 4294901760
    %v744 = vsub.f32 %v433, %v743
    %745 = vmatpush1.msra.mxu0 %v744
    %v746 = vand.u32 %v438, 4294901760
    %v747 = vsub.f32 %v438, %v746
    %748 = vmatprep.subr.mxu0 %v747
    %v749 = vand.u32 %v437, 4294901760
    %v750 = vsub.f32 %v437, %v749
    %751 = vmatpush1.msra.mxu0 %v750
    %v752 = vand.u32 %v442, 4294901760
    %v753 = vsub.f32 %v442, %v752
    %754 = vmatprep.subr.mxu0 %v753
    %v755 = vand.u32 %v441, 4294901760
    %v756 = vsub.f32 %v441, %v755
    %757 = vmatpush1.msra.mxu0 %v756
    %v758 = vand.u32 %v446, 4294901760
    %v759 = vsub.f32 %v446, %v758
    %760 = vmatprep.subr.mxu0 %v759
    %v761 = vand.u32 %v445, 4294901760
    %v762 = vsub.f32 %v445, %v761
    %763 = vmatpush1.msra.mxu0 %v762
    %v764 = vand.u32 %v450, 4294901760
    %v765 = vsub.f32 %v450, %v764
    %766 = vmatprep.subr.mxu0 %v765
    %v767 = vand.u32 %v449, 4294901760
    %v768 = vsub.f32 %v449, %v767
    %769 = vmatpush1.msra.mxu0 %v768
    %v770 = vand.u32 %v454, 4294901760
    %v771 = vsub.f32 %v454, %v770
    %772 = vmatprep.subr.mxu0 %v771
    %v773 = vand.u32 %v453, 4294901760
    %v774 = vsub.f32 %v453, %v773
    %775 = vmatpush1.msra.mxu0 %v774
    %776 = vmatprep.subr.mxu0 0.0
    %777 = vmatpush1.msra.mxu0 0.0
    %778 = vmatprep.subr.mxu0 0.0
    %779 = vmatpush1.msra.mxu0 0.0
    %780 = vmatprep.subr.mxu0 0.0
    %781 = vmatpush1.msra.mxu0 0.0
    %782 = vmatprep.subr.mxu0 0.0
    %783 = vmatpush1.msra.mxu0 0.0
    %784 = vmatprep.subr.mxu0 0.0
    %785 = vmatpush1.msra.mxu0 0.0
    %786 = vmatprep.subr.mxu0 0.0
    %787 = vmatpush1.msra.mxu0 0.0
    %788 = vmatprep.subr.mxu0 0.0
    %789 = vmatpush1.msra.mxu0 0.0
    %790 = vmatprep.subr.mxu0 0.0
    %791 = vmatpush1.msra.mxu0 0.0
    %792 = vmatprep.subr.mxu0 0.0
    %793 = vmatpush1.msra.mxu0 0.0
    %794 = vmatprep.subr.mxu0 0.0
    %795 = vmatpush1.msra.mxu0 0.0
    %796 = vmatprep.subr.mxu0 0.0
    %797 = vmatpush1.msra.mxu0 0.0
    %798 = vmatprep.subr.mxu0 0.0
    %799 = vmatpush1.msra.mxu0 0.0
    %800 = vmatprep.subr.mxu0 0.0
    %801 = vmatpush1.msra.mxu0 0.0
    %802 = vmatprep.subr.mxu0 0.0
    %803 = vmatpush1.msra.mxu0 0.0
    %804 = vmatprep.subr.mxu0 0.0
    %805 = vmatpush1.msra.mxu0 0.0
    %806 = vmatprep.subr.mxu0 0.0
    %807 = vmatpush1.msra.mxu0 0.0
    %808 = vmatprep.subr.mxu0 0.0
    %809 = vmatpush1.msra.mxu0 0.0
    %810 = vmatprep.subr.mxu0 0.0
    %811 = vmatpush1.msra.mxu0 0.0
    %812 = vmatprep.subr.mxu0 0.0
    %813 = vmatpush1.msra.mxu0 0.0
    %814 = vmatprep.subr.mxu0 0.0
    %815 = vmatpush1.msra.mxu0 0.0
    %816 = vmatprep.subr.mxu0 0.0
    %817 = vmatpush1.msra.mxu0 0.0
    %818 = vmatprep.subr.mxu0 0.0
    %819 = vmatpush1.msra.mxu0 0.0
    %820 = vmatprep.subr.mxu0 0.0
    %821 = vmatpush1.msra.mxu0 0.0
    %822 = vmatprep.mubr.f32.mxu0 0.0
    %v823 = vand.u32 %v464, 4294901760
    %v824 = vsub.f32 %v464, %v823
    %825 = vmatmul.mubr.f32.gmra.mrb[0].mxu0 %v824
    %v826 = vpop.f32.mrb[0].mxu0
    %v827 = vadd.f32 %v718, %v826
    %v828 = vpop.f32.mrb[0].mxu0
    %v829 = vadd.f32 %v720, %v828
    %830 = vdwg.mxu0
    %v831 = vand.u32 %v422, 4294901760
    %832 = vmatprep.subr.mxu0 %v831
    %v833 = vand.u32 %v421, 4294901760
    %834 = vmatpush1.msra.mxu0 %v833
    %v835 = vand.u32 %v426, 4294901760
    %836 = vmatprep.subr.mxu0 %v835
    %v837 = vand.u32 %v425, 4294901760
    %838 = vmatpush1.msra.mxu0 %v837
    %v839 = vand.u32 %v430, 4294901760
    %840 = vmatprep.subr.mxu0 %v839
    %v841 = vand.u32 %v429, 4294901760
    %842 = vmatpush1.msra.mxu0 %v841
    %v843 = vand.u32 %v434, 4294901760
    %844 = vmatprep.subr.mxu0 %v843
    %v845 = vand.u32 %v433, 4294901760
    %846 = vmatpush1.msra.mxu0 %v845
    %v847 = vand.u32 %v438, 4294901760
    %848 = vmatprep.subr.mxu0 %v847
    %v849 = vand.u32 %v437, 4294901760
    %850 = vmatpush1.msra.mxu0 %v849
    %v851 = vand.u32 %v442, 4294901760
    %852 = vmatprep.subr.mxu0 %v851
    %v853 = vand.u32 %v441, 4294901760
    %854 = vmatpush1.msra.mxu0 %v853
    %v855 = vand.u32 %v446, 4294901760
    %856 = vmatprep.subr.mxu0 %v855
    %v857 = vand.u32 %v445, 4294901760
    %858 = vmatpush1.msra.mxu0 %v857
    %v859 = vand.u32 %v450, 4294901760
    %860 = vmatprep.subr.mxu0 %v859
    %v861 = vand.u32 %v449, 4294901760
    %862 = vmatpush1.msra.mxu0 %v861
    %v863 = vand.u32 %v454, 4294901760
    %864 = vmatprep.subr.mxu0 %v863
    %v865 = vand.u32 %v453, 4294901760
    %866 = vmatpush1.msra.mxu0 %v865
    %867 = vmatprep.subr.mxu0 0.0
    %868 = vmatpush1.msra.mxu0 0.0
    %869 = vmatprep.subr.mxu0 0.0
    %870 = vmatpush1.msra.mxu0 0.0
    %871 = vmatprep.subr.mxu0 0.0
    %872 = vmatpush1.msra.mxu0 0.0
    %873 = vmatprep.subr.mxu0 0.0
    %874 = vmatpush1.msra.mxu0 0.0
    %875 = vmatprep.subr.mxu0 0.0
    %876 = vmatpush1.msra.mxu0 0.0
    %877 = vmatprep.subr.mxu0 0.0
    %878 = vmatpush1.msra.mxu0 0.0
    %879 = vmatprep.subr.mxu0 0.0
    %880 = vmatpush1.msra.mxu0 0.0
    %881 = vmatprep.subr.mxu0 0.0
    %882 = vmatpush1.msra.mxu0 0.0
    %883 = vmatprep.subr.mxu0 0.0
    %884 = vmatpush1.msra.mxu0 0.0
    %885 = vmatprep.subr.mxu0 0.0
    %886 = vmatpush1.msra.mxu0 0.0
    %887 = vmatprep.subr.mxu0 0.0
    %888 = vmatpush1.msra.mxu0 0.0
    %889 = vmatprep.subr.mxu0 0.0
    %890 = vmatpush1.msra.mxu0 0.0
    %891 = vmatprep.subr.mxu0 0.0
    %892 = vmatpush1.msra.mxu0 0.0
    %893 = vmatprep.subr.mxu0 0.0
    %894 = vmatpush1.msra.mxu0 0.0
    %895 = vmatprep.subr.mxu0 0.0
    %896 = vmatpush1.msra.mxu0 0.0
    %897 = vmatprep.subr.mxu0 0.0
    %898 = vmatpush1.msra.mxu0 0.0
    %899 = vmatprep.subr.mxu0 0.0
    %900 = vmatpush1.msra.mxu0 0.0
    %901 = vmatprep.subr.mxu0 0.0
    %902 = vmatpush1.msra.mxu0 0.0
    %903 = vmatprep.subr.mxu0 0.0
    %904 = vmatpush1.msra.mxu0 0.0
    %905 = vmatprep.subr.mxu0 0.0
    %906 = vmatpush1.msra.mxu0 0.0
    %907 = vmatprep.subr.mxu0 0.0
    %908 = vmatpush1.msra.mxu0 0.0
    %909 = vmatprep.subr.mxu0 0.0
    %910 = vmatpush1.msra.mxu0 0.0
    %911 = vmatprep.subr.mxu0 0.0
    %912 = vmatpush1.msra.mxu0 0.0
    %913 = vmatprep.mubr.f32.mxu0 0.0
    %v914 = vand.u32 %v464, 4294901760
    %v915 = vsub.f32 %v464, %v914
    %v916 = vand.u32 %v915, 4294901760
    %917 = vmatmul.mubr.f32.gmra.mrb[0].mxu0 %v916
    %v918 = vpop.f32.mrb[0].mxu0
    %v919 = vadd.f32 %v827, %v918
    %v920 = vpop.f32.mrb[0].mxu0
    %v921 = vadd.f32 %v829, %v920
    %922 = vdwg.mxu0
    %v923 = vand.u32 %v422, 4294901760
    %v924 = vsub.f32 %v422, %v923
    %v925 = vand.u32 %v924, 4294901760
    %926 = vmatprep.subr.mxu0 %v925
    %v927 = vand.u32 %v421, 4294901760
    %v928 = vsub.f32 %v421, %v927
    %v929 = vand.u32 %v928, 4294901760
    %930 = vmatpush1.msra.mxu0 %v929
    %v931 = vand.u32 %v426, 4294901760
    %v932 = vsub.f32 %v426, %v931
    %v933 = vand.u32 %v932, 4294901760
    %934 = vmatprep.subr.mxu0 %v933
    %v935 = vand.u32 %v425, 4294901760
    %v936 = vsub.f32 %v425, %v935
    %v937 = vand.u32 %v936, 4294901760
    %938 = vmatpush1.msra.mxu0 %v937
    %v939 = vand.u32 %v430, 4294901760
    %v940 = vsub.f32 %v430, %v939
    %v941 = vand.u32 %v940, 4294901760
    %942 = vmatprep.subr.mxu0 %v941
    %v943 = vand.u32 %v429, 4294901760
    %v944 = vsub.f32 %v429, %v943
    %v945 = vand.u32 %v944, 4294901760
    %946 = vmatpush1.msra.mxu0 %v945
    %v947 = vand.u32 %v434, 4294901760
    %v948 = vsub.f32 %v434, %v947
    %v949 = vand.u32 %v948, 4294901760
    %950 = vmatprep.subr.mxu0 %v949
    %v951 = vand.u32 %v433, 4294901760
    %v952 = vsub.f32 %v433, %v951
    %v953 = vand.u32 %v952, 4294901760
    %954 = vmatpush1.msra.mxu0 %v953
    %v955 = vand.u32 %v438, 4294901760
    %v956 = vsub.f32 %v438, %v955
    %v957 = vand.u32 %v956, 4294901760
    %958 = vmatprep.subr.mxu0 %v957
    %v959 = vand.u32 %v437, 4294901760
    %v960 = vsub.f32 %v437, %v959
    %v961 = vand.u32 %v960, 4294901760
    %962 = vmatpush1.msra.mxu0 %v961
    %v963 = vand.u32 %v442, 4294901760
    %v964 = vsub.f32 %v442, %v963
    %v965 = vand.u32 %v964, 4294901760
    %966 = vmatprep.subr.mxu0 %v965
    %v967 = vand.u32 %v441, 4294901760
    %v968 = vsub.f32 %v441, %v967
    %v969 = vand.u32 %v968, 4294901760
    %970 = vmatpush1.msra.mxu0 %v969
    %v971 = vand.u32 %v446, 4294901760
    %v972 = vsub.f32 %v446, %v971
    %v973 = vand.u32 %v972, 4294901760
    %974 = vmatprep.subr.mxu0 %v973
    %v975 = vand.u32 %v445, 4294901760
    %v976 = vsub.f32 %v445, %v975
    %v977 = vand.u32 %v976, 4294901760
    %978 = vmatpush1.msra.mxu0 %v977
    %v979 = vand.u32 %v450, 4294901760
    %v980 = vsub.f32 %v450, %v979
    %v981 = vand.u32 %v980, 4294901760
    %982 = vmatprep.subr.mxu0 %v981
    %v983 = vand.u32 %v449, 4294901760
    %v984 = vsub.f32 %v449, %v983
    %v985 = vand.u32 %v984, 4294901760
    %986 = vmatpush1.msra.mxu0 %v985
    %v987 = vand.u32 %v454, 4294901760
    %v988 = vsub.f32 %v454, %v987
    %v989 = vand.u32 %v988, 4294901760
    %990 = vmatprep.subr.mxu0 %v989
    %v991 = vand.u32 %v453, 4294901760
    %v992 = vsub.f32 %v453, %v991
    %v993 = vand.u32 %v992, 4294901760
    %994 = vmatpush1.msra.mxu0 %v993
    %995 = vmatprep.subr.mxu0 0.0
    %996 = vmatpush1.msra.mxu0 0.0
    %997 = vmatprep.subr.mxu0 0.0
    %998 = vmatpush1.msra.mxu0 0.0
    %999 = vmatprep.subr.mxu0 0.0
    %1000 = vmatpush1.msra.mxu0 0.0
    %1001 = vmatprep.subr.mxu0 0.0
    %1002 = vmatpush1.msra.mxu0 0.0
    %1003 = vmatprep.subr.mxu0 0.0
    %1004 = vmatpush1.msra.mxu0 0.0
    %1005 = vmatprep.subr.mxu0 0.0
    %1006 = vmatpush1.msra.mxu0 0.0
    %1007 = vmatprep.subr.mxu0 0.0
    %1008 = vmatpush1.msra.mxu0 0.0
    %1009 = vmatprep.subr.mxu0 0.0
    %1010 = vmatpush1.msra.mxu0 0.0
    %1011 = vmatprep.subr.mxu0 0.0
    %1012 = vmatpush1.msra.mxu0 0.0
    %1013 = vmatprep.subr.mxu0 0.0
    %1014 = vmatpush1.msra.mxu0 0.0
    %1015 = vmatprep.subr.mxu0 0.0
    %1016 = vmatpush1.msra.mxu0 0.0
    %1017 = vmatprep.subr.mxu0 0.0
    %1018 = vmatpush1.msra.mxu0 0.0
    %1019 = vmatprep.subr.mxu0 0.0
    %1020 = vmatpush1.msra.mxu0 0.0
    %1021 = vmatprep.subr.mxu0 0.0
    %1022 = vmatpush1.msra.mxu0 0.0
    %1023 = vmatprep.subr.mxu0 0.0
    %1024 = vmatpush1.msra.mxu0 0.0
    %1025 = vmatprep.subr.mxu0 0.0
    %1026 = vmatpush1.msra.mxu0 0.0
    %1027 = vmatprep.subr.mxu0 0.0
    %1028 = vmatpush1.msra.mxu0 0.0
    %1029 = vmatprep.subr.mxu0 0.0
    %1030 = vmatpush1.msra.mxu0 0.0
    %1031 = vmatprep.subr.mxu0 0.0
    %1032 = vmatpush1.msra.mxu0 0.0
    %1033 = vmatprep.subr.mxu0 0.0
    %1034 = vmatpush1.msra.mxu0 0.0
    %1035 = vmatprep.subr.mxu0 0.0
    %1036 = vmatpush1.msra.mxu0 0.0
    %1037 = vmatprep.subr.mxu0 0.0
    %1038 = vmatpush1.msra.mxu0 0.0
    %1039 = vmatprep.subr.mxu0 0.0
    %1040 = vmatpush1.msra.mxu0 0.0
    %1041 = vmatprep.mubr.f32.mxu0 0.0
    %v1042 = vand.u32 %v464, 4294901760
    %1043 = vmatmul.mubr.f32.gmra.mrb[0].mxu0 %v1042
    %v1044 = vpop.f32.mrb[0].mxu0
    %v1045 = vadd.f32 %v919, %v1044
    %v1046 = vpop.f32.mrb[0].mxu0
    %v1047 = vadd.f32 %v921, %v1046
    %1048 = vdwg.mxu0
    %v1049 = vand.u32 %v422, 4294901760
    %1050 = vmatprep.subr.mxu0 %v1049
    %v1051 = vand.u32 %v421, 4294901760
    %1052 = vmatpush1.msra.mxu0 %v1051
    %v1053 = vand.u32 %v426, 4294901760
    %1054 = vmatprep.subr.mxu0 %v1053
    %v1055 = vand.u32 %v425, 4294901760
    %1056 = vmatpush1.msra.mxu0 %v1055
    %v1057 = vand.u32 %v430, 4294901760
    %1058 = vmatprep.subr.mxu0 %v1057
    %v1059 = vand.u32 %v429, 4294901760
    %1060 = vmatpush1.msra.mxu0 %v1059
    %v1061 = vand.u32 %v434, 4294901760
    %1062 = vmatprep.subr.mxu0 %v1061
    %v1063 = vand.u32 %v433, 4294901760
    %1064 = vmatpush1.msra.mxu0 %v1063
    %v1065 = vand.u32 %v438, 4294901760
    %1066 = vmatprep.subr.mxu0 %v1065
    %v1067 = vand.u32 %v437, 4294901760
    %1068 = vmatpush1.msra.mxu0 %v1067
    %v1069 = vand.u32 %v442, 4294901760
    %1070 = vmatprep.subr.mxu0 %v1069
    %v1071 = vand.u32 %v441, 4294901760
    %1072 = vmatpush1.msra.mxu0 %v1071
    %v1073 = vand.u32 %v446, 4294901760
    %1074 = vmatprep.subr.mxu0 %v1073
    %v1075 = vand.u32 %v445, 4294901760
    %1076 = vmatpush1.msra.mxu0 %v1075
    %v1077 = vand.u32 %v450, 4294901760
    %1078 = vmatprep.subr.mxu0 %v1077
    %v1079 = vand.u32 %v449, 4294901760
    %1080 = vmatpush1.msra.mxu0 %v1079
    %v1081 = vand.u32 %v454, 4294901760
    %1082 = vmatprep.subr.mxu0 %v1081
    %v1083 = vand.u32 %v453, 4294901760
    %1084 = vmatpush1.msra.mxu0 %v1083
    %1085 = vmatprep.subr.mxu0 0.0
    %1086 = vmatpush1.msra.mxu0 0.0
    %1087 = vmatprep.subr.mxu0 0.0
    %1088 = vmatpush1.msra.mxu0 0.0
    %1089 = vmatprep.subr.mxu0 0.0
    %1090 = vmatpush1.msra.mxu0 0.0
    %1091 = vmatprep.subr.mxu0 0.0
    %1092 = vmatpush1.msra.mxu0 0.0
    %1093 = vmatprep.subr.mxu0 0.0
    %1094 = vmatpush1.msra.mxu0 0.0
    %1095 = vmatprep.subr.mxu0 0.0
    %1096 = vmatpush1.msra.mxu0 0.0
    %1097 = vmatprep.subr.mxu0 0.0
    %1098 = vmatpush1.msra.mxu0 0.0
    %1099 = vmatprep.subr.mxu0 0.0
    %1100 = vmatpush1.msra.mxu0 0.0
    %1101 = vmatprep.subr.mxu0 0.0
    %1102 = vmatpush1.msra.mxu0 0.0
    %1103 = vmatprep.subr.mxu0 0.0
    %1104 = vmatpush1.msra.mxu0 0.0
    %1105 = vmatprep.subr.mxu0 0.0
    %1106 = vmatpush1.msra.mxu0 0.0
    %1107 = vmatprep.subr.mxu0 0.0
    %1108 = vmatpush1.msra.mxu0 0.0
    %1109 = vmatprep.subr.mxu0 0.0
    %1110 = vmatpush1.msra.mxu0 0.0
    %1111 = vmatprep.subr.mxu0 0.0
    %1112 = vmatpush1.msra.mxu0 0.0
    %1113 = vmatprep.subr.mxu0 0.0
    %1114 = vmatpush1.msra.mxu0 0.0
    %1115 = vmatprep.subr.mxu0 0.0
    %1116 = vmatpush1.msra.mxu0 0.0
    %1117 = vmatprep.subr.mxu0 0.0
    %1118 = vmatpush1.msra.mxu0 0.0
    %1119 = vmatprep.subr.mxu0 0.0
    %1120 = vmatpush1.msra.mxu0 0.0
    %1121 = vmatprep.subr.mxu0 0.0
    %1122 = vmatpush1.msra.mxu0 0.0
    %1123 = vmatprep.subr.mxu0 0.0
    %1124 = vmatpush1.msra.mxu0 0.0
    %1125 = vmatprep.subr.mxu0 0.0
    %1126 = vmatpush1.msra.mxu0 0.0
    %1127 = vmatprep.subr.mxu0 0.0
    %1128 = vmatpush1.msra.mxu0 0.0
    %1129 = vmatprep.subr.mxu0 0.0
    %1130 = vmatpush1.msra.mxu0 0.0
    %1131 = vmatprep.mubr.f32.mxu0 0.0
    %v1132 = vand.u32 %v464, 4294901760
    %1133 = vmatmul.mubr.f32.gmra.mrb[0].mxu0 %v1132
    %v1134 = vpop.f32.mrb[0].mxu0
    %v1135 = vadd.f32 %v1045, %v1134
    %v1136 = vpop.f32.mrb[0].mxu0
    %v1137 = vadd.f32 %v1047, %v1136
    %1138 = vdwg.mxu0
    %v1139 = vand.u32 %v424, 4294901760
    %1140 = vmatprep.subr.mxu0 %v1139
    %v1141 = vand.u32 %v423, 4294901760
    %1142 = vmatpush1.msra.mxu0 %v1141
    %v1143 = vand.u32 %v428, 4294901760
    %1144 = vmatprep.subr.mxu0 %v1143
    %v1145 = vand.u32 %v427, 4294901760
    %1146 = vmatpush1.msra.mxu0 %v1145
    %v1147 = vand.u32 %v432, 4294901760
    %1148 = vmatprep.subr.mxu0 %v1147
    %v1149 = vand.u32 %v431, 4294901760
    %1150 = vmatpush1.msra.mxu0 %v1149
    %v1151 = vand.u32 %v436, 4294901760
    %1152 = vmatprep.subr.mxu0 %v1151
    %v1153 = vand.u32 %v435, 4294901760
    %1154 = vmatpush1.msra.mxu0 %v1153
    %v1155 = vand.u32 %v440, 4294901760
    %1156 = vmatprep.subr.mxu0 %v1155
    %v1157 = vand.u32 %v439, 4294901760
    %1158 = vmatpush1.msra.mxu0 %v1157
    %v1159 = vand.u32 %v444, 4294901760
    %1160 = vmatprep.subr.mxu0 %v1159
    %v1161 = vand.u32 %v443, 4294901760
    %1162 = vmatpush1.msra.mxu0 %v1161
    %v1163 = vand.u32 %v448, 4294901760
    %1164 = vmatprep.subr.mxu0 %v1163
    %v1165 = vand.u32 %v447, 4294901760
    %1166 = vmatpush1.msra.mxu0 %v1165
    %v1167 = vand.u32 %v452, 4294901760
    %1168 = vmatprep.subr.mxu0 %v1167
    %v1169 = vand.u32 %v451, 4294901760
    %1170 = vmatpush1.msra.mxu0 %v1169
    %v1171 = vand.u32 %v456, 4294901760
    %1172 = vmatprep.subr.mxu0 %v1171
    %v1173 = vand.u32 %v455, 4294901760
    %1174 = vmatpush1.msra.mxu0 %v1173
    %1175 = vmatprep.subr.mxu0 0.0
    %1176 = vmatpush1.msra.mxu0 0.0
    %1177 = vmatprep.subr.mxu0 0.0
    %1178 = vmatpush1.msra.mxu0 0.0
    %1179 = vmatprep.subr.mxu0 0.0
    %1180 = vmatpush1.msra.mxu0 0.0
    %1181 = vmatprep.subr.mxu0 0.0
    %1182 = vmatpush1.msra.mxu0 0.0
    %1183 = vmatprep.subr.mxu0 0.0
    %1184 = vmatpush1.msra.mxu0 0.0
    %1185 = vmatprep.subr.mxu0 0.0
    %1186 = vmatpush1.msra.mxu0 0.0
    %1187 = vmatprep.subr.mxu0 0.0
    %1188 = vmatpush1.msra.mxu0 0.0
    %1189 = vmatprep.subr.mxu0 0.0
    %1190 = vmatpush1.msra.mxu0 0.0
    %1191 = vmatprep.subr.mxu0 0.0
    %1192 = vmatpush1.msra.mxu0 0.0
    %1193 = vmatprep.subr.mxu0 0.0
    %1194 = vmatpush1.msra.mxu0 0.0
    %1195 = vmatprep.subr.mxu0 0.0
    %1196 = vmatpush1.msra.mxu0 0.0
    %1197 = vmatprep.subr.mxu0 0.0
    %1198 = vmatpush1.msra.mxu0 0.0
    %1199 = vmatprep.subr.mxu0 0.0
    %1200 = vmatpush1.msra.mxu0 0.0
    %1201 = vmatprep.subr.mxu0 0.0
    %1202 = vmatpush1.msra.mxu0 0.0
    %1203 = vmatprep.subr.mxu0 0.0
    %1204 = vmatpush1.msra.mxu0 0.0
    %1205 = vmatprep.subr.mxu0 0.0
    %1206 = vmatpush1.msra.mxu0 0.0
    %1207 = vmatprep.subr.mxu0 0.0
    %1208 = vmatpush1.msra.mxu0 0.0
    %1209 = vmatprep.subr.mxu0 0.0
    %1210 = vmatpush1.msra.mxu0 0.0
    %1211 = vmatprep.subr.mxu0 0.0
    %1212 = vmatpush1.msra.mxu0 0.0
    %1213 = vmatprep.subr.mxu0 0.0
    %1214 = vmatpush1.msra.mxu0 0.0
    %1215 = vmatprep.subr.mxu0 0.0
    %1216 = vmatpush1.msra.mxu0 0.0
    %1217 = vmatprep.subr.mxu0 0.0
    %1218 = vmatpush1.msra.mxu0 0.0
    %1219 = vmatprep.subr.mxu0 0.0
    %1220 = vmatpush1.msra.mxu0 0.0
    %1221 = vmatprep.mubr.f32.mxu0 0.0
    %v1222 = vand.u32 %v464, 4294901760
    %v1223 = vsub.f32 %v464, %v1222
    %v1224 = vand.u32 %v1223, 4294901760
    %v1225 = vsub.f32 %v1223, %v1224
    %v1226 = vand.u32 %v1225, 4294901760
    %1227 = vmatmul.mubr.f32.gmra.mrb[0].mxu0 %v1226
    %v1228 = vpop.f32.mrb[0].mxu0
    %v1229 = vadd.f32 %v460, %v1228
    %v1230 = vpop.f32.mrb[0].mxu0
    %v1231 = vadd.f32 %v460, %v1230
    %1232 = vdwg.mxu0
    %v1233 = vand.u32 %v424, 4294901760
    %v1234 = vsub.f32 %v424, %v1233
    %v1235 = vand.u32 %v1234, 4294901760
    %v1236 = vsub.f32 %v1234, %v1235
    %v1237 = vand.u32 %v1236, 4294901760
    %1238 = vmatprep.subr.mxu0 %v1237
    %v1239 = vand.u32 %v423, 4294901760
    %v1240 = vsub.f32 %v423, %v1239
    %v1241 = vand.u32 %v1240, 4294901760
    %v1242 = vsub.f32 %v1240, %v1241
    %v1243 = vand.u32 %v1242, 4294901760
    %1244 = vmatpush1.msra.mxu0 %v1243
    %v1245 = vand.u32 %v428, 4294901760
    %v1246 = vsub.f32 %v428, %v1245
    %v1247 = vand.u32 %v1246, 4294901760
    %v1248 = vsub.f32 %v1246, %v1247
    %v1249 = vand.u32 %v1248, 4294901760
    %1250 = vmatprep.subr.mxu0 %v1249
    %v1251 = vand.u32 %v427, 4294901760
    %v1252 = vsub.f32 %v427, %v1251
    %v1253 = vand.u32 %v1252, 4294901760
    %v1254 = vsub.f32 %v1252, %v1253
    %v1255 = vand.u32 %v1254, 4294901760
    %1256 = vmatpush1.msra.mxu0 %v1255
    %v1257 = vand.u32 %v432, 4294901760
    %v1258 = vsub.f32 %v432, %v1257
    %v1259 = vand.u32 %v1258, 4294901760
    %v1260 = vsub.f32 %v1258, %v1259
    %v1261 = vand.u32 %v1260, 4294901760
    %1262 = vmatprep.subr.mxu0 %v1261
    %v1263 = vand.u32 %v431, 4294901760
    %v1264 = vsub.f32 %v431, %v1263
    %v1265 = vand.u32 %v1264, 4294901760
    %v1266 = vsub.f32 %v1264, %v1265
    %v1267 = vand.u32 %v1266, 4294901760
    %1268 = vmatpush1.msra.mxu0 %v1267
    %v1269 = vand.u32 %v436, 4294901760
    %v1270 = vsub.f32 %v436, %v1269
    %v1271 = vand.u32 %v1270, 4294901760
    %v1272 = vsub.f32 %v1270, %v1271
    %v1273 = vand.u32 %v1272, 4294901760
    %1274 = vmatprep.subr.mxu0 %v1273
    %v1275 = vand.u32 %v435, 4294901760
    %v1276 = vsub.f32 %v435, %v1275
    %v1277 = vand.u32 %v1276, 4294901760
    %v1278 = vsub.f32 %v1276, %v1277
    %v1279 = vand.u32 %v1278, 4294901760
    %1280 = vmatpush1.msra.mxu0 %v1279
    %v1281 = vand.u32 %v440, 4294901760
    %v1282 = vsub.f32 %v440, %v1281
    %v1283 = vand.u32 %v1282, 4294901760
    %v1284 = vsub.f32 %v1282, %v1283
    %v1285 = vand.u32 %v1284, 4294901760
    %1286 = vmatprep.subr.mxu0 %v1285
    %v1287 = vand.u32 %v439, 4294901760
    %v1288 = vsub.f32 %v439, %v1287
    %v1289 = vand.u32 %v1288, 4294901760
    %v1290 = vsub.f32 %v1288, %v1289
    %v1291 = vand.u32 %v1290, 4294901760
    %1292 = vmatpush1.msra.mxu0 %v1291
    %v1293 = vand.u32 %v444, 4294901760
    %v1294 = vsub.f32 %v444, %v1293
    %v1295 = vand.u32 %v1294, 4294901760
    %v1296 = vsub.f32 %v1294, %v1295
    %v1297 = vand.u32 %v1296, 4294901760
    %1298 = vmatprep.subr.mxu0 %v1297
    %v1299 = vand.u32 %v443, 4294901760
    %v1300 = vsub.f32 %v443, %v1299
    %v1301 = vand.u32 %v1300, 4294901760
    %v1302 = vsub.f32 %v1300, %v1301
    %v1303 = vand.u32 %v1302, 4294901760
    %1304 = vmatpush1.msra.mxu0 %v1303
    %v1305 = vand.u32 %v448, 4294901760
    %v1306 = vsub.f32 %v448, %v1305
    %v1307 = vand.u32 %v1306, 4294901760
    %v1308 = vsub.f32 %v1306, %v1307
    %v1309 = vand.u32 %v1308, 4294901760
    %1310 = vmatprep.subr.mxu0 %v1309
    %v1311 = vand.u32 %v447, 4294901760
    %v1312 = vsub.f32 %v447, %v1311
    %v1313 = vand.u32 %v1312, 4294901760
    %v1314 = vsub.f32 %v1312, %v1313
    %v1315 = vand.u32 %v1314, 4294901760
    %1316 = vmatpush1.msra.mxu0 %v1315
    %v1317 = vand.u32 %v452, 4294901760
    %v1318 = vsub.f32 %v452, %v1317
    %v1319 = vand.u32 %v1318, 4294901760
    %v1320 = vsub.f32 %v1318, %v1319
    %v1321 = vand.u32 %v1320, 4294901760
    %1322 = vmatprep.subr.mxu0 %v1321
    %v1323 = vand.u32 %v451, 4294901760
    %v1324 = vsub.f32 %v451, %v1323
    %v1325 = vand.u32 %v1324, 4294901760
    %v1326 = vsub.f32 %v1324, %v1325
    %v1327 = vand.u32 %v1326, 4294901760
    %1328 = vmatpush1.msra.mxu0 %v1327
    %v1329 = vand.u32 %v456, 4294901760
    %v1330 = vsub.f32 %v456, %v1329
    %v1331 = vand.u32 %v1330, 4294901760
    %v1332 = vsub.f32 %v1330, %v1331
    %v1333 = vand.u32 %v1332, 4294901760
    %1334 = vmatprep.subr.mxu0 %v1333
    %v1335 = vand.u32 %v455, 4294901760
    %v1336 = vsub.f32 %v455, %v1335
    %v1337 = vand.u32 %v1336, 4294901760
    %v1338 = vsub.f32 %v1336, %v1337
    %v1339 = vand.u32 %v1338, 4294901760
    %1340 = vmatpush1.msra.mxu0 %v1339
    %1341 = vmatprep.subr.mxu0 0.0
    %1342 = vmatpush1.msra.mxu0 0.0
    %1343 = vmatprep.subr.mxu0 0.0
    %1344 = vmatpush1.msra.mxu0 0.0
    %1345 = vmatprep.subr.mxu0 0.0
    %1346 = vmatpush1.msra.mxu0 0.0
    %1347 = vmatprep.subr.mxu0 0.0
    %1348 = vmatpush1.msra.mxu0 0.0
    %1349 = vmatprep.subr.mxu0 0.0
    %1350 = vmatpush1.msra.mxu0 0.0
    %1351 = vmatprep.subr.mxu0 0.0
    %1352 = vmatpush1.msra.mxu0 0.0
    %1353 = vmatprep.subr.mxu0 0.0
    %1354 = vmatpush1.msra.mxu0 0.0
    %1355 = vmatprep.subr.mxu0 0.0
    %1356 = vmatpush1.msra.mxu0 0.0
    %1357 = vmatprep.subr.mxu0 0.0
    %1358 = vmatpush1.msra.mxu0 0.0
    %1359 = vmatprep.subr.mxu0 0.0
    %1360 = vmatpush1.msra.mxu0 0.0
    %1361 = vmatprep.subr.mxu0 0.0
    %1362 = vmatpush1.msra.mxu0 0.0
    %1363 = vmatprep.subr.mxu0 0.0
    %1364 = vmatpush1.msra.mxu0 0.0
    %1365 = vmatprep.subr.mxu0 0.0
    %1366 = vmatpush1.msra.mxu0 0.0
    %1367 = vmatprep.subr.mxu0 0.0
    %1368 = vmatpush1.msra.mxu0 0.0
    %1369 = vmatprep.subr.mxu0 0.0
    %1370 = vmatpush1.msra.mxu0 0.0
    %1371 = vmatprep.subr.mxu0 0.0
    %1372 = vmatpush1.msra.mxu0 0.0
    %1373 = vmatprep.subr.mxu0 0.0
    %1374 = vmatpush1.msra.mxu0 0.0
    %1375 = vmatprep.subr.mxu0 0.0
    %1376 = vmatpush1.msra.mxu0 0.0
    %1377 = vmatprep.subr.mxu0 0.0
    %1378 = vmatpush1.msra.mxu0 0.0
    %1379 = vmatprep.subr.mxu0 0.0
    %1380 = vmatpush1.msra.mxu0 0.0
    %1381 = vmatprep.subr.mxu0 0.0
    %1382 = vmatpush1.msra.mxu0 0.0
    %1383 = vmatprep.subr.mxu0 0.0
    %1384 = vmatpush1.msra.mxu0 0.0
    %1385 = vmatprep.subr.mxu0 0.0
    %1386 = vmatpush1.msra.mxu0 0.0
    %1387 = vmatprep.mubr.f32.mxu0 0.0
    %v1388 = vand.u32 %v464, 4294901760
    %1389 = vmatmul.mubr.f32.gmra.mrb[0].mxu0 %v1388
    %v1390 = vpop.f32.mrb[0].mxu0
    %v1391 = vadd.f32 %v1229, %v1390
    %v1392 = vpop.f32.mrb[0].mxu0
    %v1393 = vadd.f32 %v1231, %v1392
    %1394 = vdwg.mxu0
    %v1395 = vand.u32 %v424, 4294901760
    %v1396 = vsub.f32 %v424, %v1395
    %1397 = vmatprep.subr.mxu0 %v1396
    %v1398 = vand.u32 %v423, 4294901760
    %v1399 = vsub.f32 %v423, %v1398
    %1400 = vmatpush1.msra.mxu0 %v1399
    %v1401 = vand.u32 %v428, 4294901760
    %v1402 = vsub.f32 %v428, %v1401
    %1403 = vmatprep.subr.mxu0 %v1402
    %v1404 = vand.u32 %v427, 4294901760
    %v1405 = vsub.f32 %v427, %v1404
    %1406 = vmatpush1.msra.mxu0 %v1405
    %v1407 = vand.u32 %v432, 4294901760
    %v1408 = vsub.f32 %v432, %v1407
    %1409 = vmatprep.subr.mxu0 %v1408
    %v1410 = vand.u32 %v431, 4294901760
    %v1411 = vsub.f32 %v431, %v1410
    %1412 = vmatpush1.msra.mxu0 %v1411
    %v1413 = vand.u32 %v436, 4294901760
    %v1414 = vsub.f32 %v436, %v1413
    %1415 = vmatprep.subr.mxu0 %v1414
    %v1416 = vand.u32 %v435, 4294901760
    %v1417 = vsub.f32 %v435, %v1416
    %1418 = vmatpush1.msra.mxu0 %v1417
    %v1419 = vand.u32 %v440, 4294901760
    %v1420 = vsub.f32 %v440, %v1419
    %1421 = vmatprep.subr.mxu0 %v1420
    %v1422 = vand.u32 %v439, 4294901760
    %v1423 = vsub.f32 %v439, %v1422
    %1424 = vmatpush1.msra.mxu0 %v1423
    %v1425 = vand.u32 %v444, 4294901760
    %v1426 = vsub.f32 %v444, %v1425
    %1427 = vmatprep.subr.mxu0 %v1426
    %v1428 = vand.u32 %v443, 4294901760
    %v1429 = vsub.f32 %v443, %v1428
    %1430 = vmatpush1.msra.mxu0 %v1429
    %v1431 = vand.u32 %v448, 4294901760
    %v1432 = vsub.f32 %v448, %v1431
    %1433 = vmatprep.subr.mxu0 %v1432
    %v1434 = vand.u32 %v447, 4294901760
    %v1435 = vsub.f32 %v447, %v1434
    %1436 = vmatpush1.msra.mxu0 %v1435
    %v1437 = vand.u32 %v452, 4294901760
    %v1438 = vsub.f32 %v452, %v1437
    %1439 = vmatprep.subr.mxu0 %v1438
    %v1440 = vand.u32 %v451, 4294901760
    %v1441 = vsub.f32 %v451, %v1440
    %1442 = vmatpush1.msra.mxu0 %v1441
    %v1443 = vand.u32 %v456, 4294901760
    %v1444 = vsub.f32 %v456, %v1443
    %1445 = vmatprep.subr.mxu0 %v1444
    %v1446 = vand.u32 %v455, 4294901760
    %v1447 = vsub.f32 %v455, %v1446
    %1448 = vmatpush1.msra.mxu0 %v1447
    %1449 = vmatprep.subr.mxu0 0.0
    %1450 = vmatpush1.msra.mxu0 0.0
    %1451 = vmatprep.subr.mxu0 0.0
    %1452 = vmatpush1.msra.mxu0 0.0
    %1453 = vmatprep.subr.mxu0 0.0
    %1454 = vmatpush1.msra.mxu0 0.0
    %1455 = vmatprep.subr.mxu0 0.0
    %1456 = vmatpush1.msra.mxu0 0.0
    %1457 = vmatprep.subr.mxu0 0.0
    %1458 = vmatpush1.msra.mxu0 0.0
    %1459 = vmatprep.subr.mxu0 0.0
    %1460 = vmatpush1.msra.mxu0 0.0
    %1461 = vmatprep.subr.mxu0 0.0
    %1462 = vmatpush1.msra.mxu0 0.0
    %1463 = vmatprep.subr.mxu0 0.0
    %1464 = vmatpush1.msra.mxu0 0.0
    %1465 = vmatprep.subr.mxu0 0.0
    %1466 = vmatpush1.msra.mxu0 0.0
    %1467 = vmatprep.subr.mxu0 0.0
    %1468 = vmatpush1.msra.mxu0 0.0
    %1469 = vmatprep.subr.mxu0 0.0
    %1470 = vmatpush1.msra.mxu0 0.0
    %1471 = vmatprep.subr.mxu0 0.0
    %1472 = vmatpush1.msra.mxu0 0.0
    %1473 = vmatprep.subr.mxu0 0.0
    %1474 = vmatpush1.msra.mxu0 0.0
    %1475 = vmatprep.subr.mxu0 0.0
    %1476 = vmatpush1.msra.mxu0 0.0
    %1477 = vmatprep.subr.mxu0 0.0
    %1478 = vmatpush1.msra.mxu0 0.0
    %1479 = vmatprep.subr.mxu0 0.0
    %1480 = vmatpush1.msra.mxu0 0.0
    %1481 = vmatprep.subr.mxu0 0.0
    %1482 = vmatpush1.msra.mxu0 0.0
    %1483 = vmatprep.subr.mxu0 0.0
    %1484 = vmatpush1.msra.mxu0 0.0
    %1485 = vmatprep.subr.mxu0 0.0
    %1486 = vmatpush1.msra.mxu0 0.0
    %1487 = vmatprep.subr.mxu0 0.0
    %1488 = vmatpush1.msra.mxu0 0.0
    %1489 = vmatprep.subr.mxu0 0.0
    %1490 = vmatpush1.msra.mxu0 0.0
    %1491 = vmatprep.subr.mxu0 0.0
    %1492 = vmatpush1.msra.mxu0 0.0
    %1493 = vmatprep.subr.mxu0 0.0
    %1494 = vmatpush1.msra.mxu0 0.0
    %1495 = vmatprep.mubr.f32.mxu0 0.0
    %v1496 = vand.u32 %v464, 4294901760
    %v1497 = vsub.f32 %v464, %v1496
    %1498 = vmatmul.mubr.f32.gmra.mrb[0].mxu0 %v1497
    %v1499 = vpop.f32.mrb[0].mxu0
    %v1500 = vadd.f32 %v1391, %v1499
    %v1501 = vpop.f32.mrb[0].mxu0
    %v1502 = vadd.f32 %v1393, %v1501
    %1503 = vdwg.mxu0
    %v1504 = vand.u32 %v424, 4294901760
    %1505 = vmatprep.subr.mxu0 %v1504
    %v1506 = vand.u32 %v423, 4294901760
    %1507 = vmatpush1.msra.mxu0 %v1506
    %v1508 = vand.u32 %v428, 4294901760
    %1509 = vmatprep.subr.mxu0 %v1508
    %v1510 = vand.u32 %v427, 4294901760
    %1511 = vmatpush1.msra.mxu0 %v1510
    %v1512 = vand.u32 %v432, 4294901760
    %1513 = vmatprep.subr.mxu0 %v1512
    %v1514 = vand.u32 %v431, 4294901760
    %1515 = vmatpush1.msra.mxu0 %v1514
    %v1516 = vand.u32 %v436, 4294901760
    %1517 = vmatprep.subr.mxu0 %v1516
    %v1518 = vand.u32 %v435, 4294901760
    %1519 = vmatpush1.msra.mxu0 %v1518
    %v1520 = vand.u32 %v440, 4294901760
    %1521 = vmatprep.subr.mxu0 %v1520
    %v1522 = vand.u32 %v439, 4294901760
    %1523 = vmatpush1.msra.mxu0 %v1522
    %v1524 = vand.u32 %v444, 4294901760
    %1525 = vmatprep.subr.mxu0 %v1524
    %v1526 = vand.u32 %v443, 4294901760
    %1527 = vmatpush1.msra.mxu0 %v1526
    %v1528 = vand.u32 %v448, 4294901760
    %1529 = vmatprep.subr.mxu0 %v1528
    %v1530 = vand.u32 %v447, 4294901760
    %1531 = vmatpush1.msra.mxu0 %v1530
    %v1532 = vand.u32 %v452, 4294901760
    %1533 = vmatprep.subr.mxu0 %v1532
    %v1534 = vand.u32 %v451, 4294901760
    %1535 = vmatpush1.msra.mxu0 %v1534
    %v1536 = vand.u32 %v456, 4294901760
    %1537 = vmatprep.subr.mxu0 %v1536
    %v1538 = vand.u32 %v455, 4294901760
    %1539 = vmatpush1.msra.mxu0 %v1538
    %1540 = vmatprep.subr.mxu0 0.0
    %1541 = vmatpush1.msra.mxu0 0.0
    %1542 = vmatprep.subr.mxu0 0.0
    %1543 = vmatpush1.msra.mxu0 0.0
    %1544 = vmatprep.subr.mxu0 0.0
    %1545 = vmatpush1.msra.mxu0 0.0
    %1546 = vmatprep.subr.mxu0 0.0
    %1547 = vmatpush1.msra.mxu0 0.0
    %1548 = vmatprep.subr.mxu0 0.0
    %1549 = vmatpush1.msra.mxu0 0.0
    %1550 = vmatprep.subr.mxu0 0.0
    %1551 = vmatpush1.msra.mxu0 0.0
    %1552 = vmatprep.subr.mxu0 0.0
    %1553 = vmatpush1.msra.mxu0 0.0
    %1554 = vmatprep.subr.mxu0 0.0
    %1555 = vmatpush1.msra.mxu0 0.0
    %1556 = vmatprep.subr.mxu0 0.0
    %1557 = vmatpush1.msra.mxu0 0.0
    %1558 = vmatprep.subr.mxu0 0.0
    %1559 = vmatpush1.msra.mxu0 0.0
    %1560 = vmatprep.subr.mxu0 0.0
    %1561 = vmatpush1.msra.mxu0 0.0
    %1562 = vmatprep.subr.mxu0 0.0
    %1563 = vmatpush1.msra.mxu0 0.0
    %1564 = vmatprep.subr.mxu0 0.0
    %1565 = vmatpush1.msra.mxu0 0.0
    %1566 = vmatprep.subr.mxu0 0.0
    %1567 = vmatpush1.msra.mxu0 0.0
    %1568 = vmatprep.subr.mxu0 0.0
    %1569 = vmatpush1.msra.mxu0 0.0
    %1570 = vmatprep.subr.mxu0 0.0
    %1571 = vmatpush1.msra.mxu0 0.0
    %1572 = vmatprep.subr.mxu0 0.0
    %1573 = vmatpush1.msra.mxu0 0.0
    %1574 = vmatprep.subr.mxu0 0.0
    %1575 = vmatpush1.msra.mxu0 0.0
    %1576 = vmatprep.subr.mxu0 0.0
    %1577 = vmatpush1.msra.mxu0 0.0
    %1578 = vmatprep.subr.mxu0 0.0
    %1579 = vmatpush1.msra.mxu0 0.0
    %1580 = vmatprep.subr.mxu0 0.0
    %1581 = vmatpush1.msra.mxu0 0.0
    %1582 = vmatprep.subr.mxu0 0.0
    %1583 = vmatpush1.msra.mxu0 0.0
    %1584 = vmatprep.subr.mxu0 0.0
    %1585 = vmatpush1.msra.mxu0 0.0
    %1586 = vmatprep.mubr.f32.mxu0 0.0
    %v1587 = vand.u32 %v464, 4294901760
    %v1588 = vsub.f32 %v464, %v1587
    %v1589 = vand.u32 %v1588, 4294901760
    %1590 = vmatmul.mubr.f32.gmra.mrb[0].mxu0 %v1589
    %v1591 = vpop.f32.mrb[0].mxu0
    %v1592 = vadd.f32 %v1500, %v1591
    %v1593 = vpop.f32.mrb[0].mxu0
    %v1594 = vadd.f32 %v1502, %v1593
    %1595 = vdwg.mxu0
    %v1596 = vand.u32 %v424, 4294901760
    %v1597 = vsub.f32 %v424, %v1596
    %v1598 = vand.u32 %v1597, 4294901760
    %1599 = vmatprep.subr.mxu0 %v1598
    %v1600 = vand.u32 %v423, 4294901760
    %v1601 = vsub.f32 %v423, %v1600
    %v1602 = vand.u32 %v1601, 4294901760
    %1603 = vmatpush1.msra.mxu0 %v1602
    %v1604 = vand.u32 %v428, 4294901760
    %v1605 = vsub.f32 %v428, %v1604
    %v1606 = vand.u32 %v1605, 4294901760
    %1607 = vmatprep.subr.mxu0 %v1606
    %v1608 = vand.u32 %v427, 4294901760
    %v1609 = vsub.f32 %v427, %v1608
    %v1610 = vand.u32 %v1609, 4294901760
    %1611 = vmatpush1.msra.mxu0 %v1610
    %v1612 = vand.u32 %v432, 4294901760
    %v1613 = vsub.f32 %v432, %v1612
    %v1614 = vand.u32 %v1613, 4294901760
    %1615 = vmatprep.subr.mxu0 %v1614
    %v1616 = vand.u32 %v431, 4294901760
    %v1617 = vsub.f32 %v431, %v1616
    %v1618 = vand.u32 %v1617, 4294901760
    %1619 = vmatpush1.msra.mxu0 %v1618
    %v1620 = vand.u32 %v436, 4294901760
    %v1621 = vsub.f32 %v436, %v1620
    %v1622 = vand.u32 %v1621, 4294901760
    %1623 = vmatprep.subr.mxu0 %v1622
    %v1624 = vand.u32 %v435, 4294901760
    %v1625 = vsub.f32 %v435, %v1624
    %v1626 = vand.u32 %v1625, 4294901760
    %1627 = vmatpush1.msra.mxu0 %v1626
    %v1628 = vand.u32 %v440, 4294901760
    %v1629 = vsub.f32 %v440, %v1628
    %v1630 = vand.u32 %v1629, 4294901760
    %1631 = vmatprep.subr.mxu0 %v1630
    %v1632 = vand.u32 %v439, 4294901760
    %v1633 = vsub.f32 %v439, %v1632
    %v1634 = vand.u32 %v1633, 4294901760
    %1635 = vmatpush1.msra.mxu0 %v1634
    %v1636 = vand.u32 %v444, 4294901760
    %v1637 = vsub.f32 %v444, %v1636
    %v1638 = vand.u32 %v1637, 4294901760
    %1639 = vmatprep.subr.mxu0 %v1638
    %v1640 = vand.u32 %v443, 4294901760
    %v1641 = vsub.f32 %v443, %v1640
    %v1642 = vand.u32 %v1641, 4294901760
    %1643 = vmatpush1.msra.mxu0 %v1642
    %v1644 = vand.u32 %v448, 4294901760
    %v1645 = vsub.f32 %v448, %v1644
    %v1646 = vand.u32 %v1645, 4294901760
    %1647 = vmatprep.subr.mxu0 %v1646
    %v1648 = vand.u32 %v447, 4294901760
    %v1649 = vsub.f32 %v447, %v1648
    %v1650 = vand.u32 %v1649, 4294901760
    %1651 = vmatpush1.msra.mxu0 %v1650
    %v1652 = vand.u32 %v452, 4294901760
    %v1653 = vsub.f32 %v452, %v1652
    %v1654 = vand.u32 %v1653, 4294901760
    %1655 = vmatprep.subr.mxu0 %v1654
    %v1656 = vand.u32 %v451, 4294901760
    %v1657 = vsub.f32 %v451, %v1656
    %v1658 = vand.u32 %v1657, 4294901760
    %1659 = vmatpush1.msra.mxu0 %v1658
    %v1660 = vand.u32 %v456, 4294901760
    %v1661 = vsub.f32 %v456, %v1660
    %v1662 = vand.u32 %v1661, 4294901760
    %1663 = vmatprep.subr.mxu0 %v1662
    %v1664 = vand.u32 %v455, 4294901760
    %v1665 = vsub.f32 %v455, %v1664
    %v1666 = vand.u32 %v1665, 4294901760
    %1667 = vmatpush1.msra.mxu0 %v1666
    %1668 = vmatprep.subr.mxu0 0.0
    %1669 = vmatpush1.msra.mxu0 0.0
    %1670 = vmatprep.subr.mxu0 0.0
    %1671 = vmatpush1.msra.mxu0 0.0
    %1672 = vmatprep.subr.mxu0 0.0
    %1673 = vmatpush1.msra.mxu0 0.0
    %1674 = vmatprep.subr.mxu0 0.0
    %1675 = vmatpush1.msra.mxu0 0.0
    %1676 = vmatprep.subr.mxu0 0.0
    %1677 = vmatpush1.msra.mxu0 0.0
    %1678 = vmatprep.subr.mxu0 0.0
    %1679 = vmatpush1.msra.mxu0 0.0
    %1680 = vmatprep.subr.mxu0 0.0
    %1681 = vmatpush1.msra.mxu0 0.0
    %1682 = vmatprep.subr.mxu0 0.0
    %1683 = vmatpush1.msra.mxu0 0.0
    %1684 = vmatprep.subr.mxu0 0.0
    %1685 = vmatpush1.msra.mxu0 0.0
    %1686 = vmatprep.subr.mxu0 0.0
    %1687 = vmatpush1.msra.mxu0 0.0
    %1688 = vmatprep.subr.mxu0 0.0
    %1689 = vmatpush1.msra.mxu0 0.0
    %1690 = vmatprep.subr.mxu0 0.0
    %1691 = vmatpush1.msra.mxu0 0.0
    %1692 = vmatprep.subr.mxu0 0.0
    %1693 = vmatpush1.msra.mxu0 0.0
    %1694 = vmatprep.subr.mxu0 0.0
    %1695 = vmatpush1.msra.mxu0 0.0
    %1696 = vmatprep.subr.mxu0 0.0
    %1697 = vmatpush1.msra.mxu0 0.0
    %1698 = vmatprep.subr.mxu0 0.0
    %1699 = vmatpush1.msra.mxu0 0.0
    %1700 = vmatprep.subr.mxu0 0.0
    %1701 = vmatpush1.msra.mxu0 0.0
    %1702 = vmatprep.subr.mxu0 0.0
    %1703 = vmatpush1.msra.mxu0 0.0
    %1704 = vmatprep.subr.mxu0 0.0
    %1705 = vmatpush1.msra.mxu0 0.0
    %1706 = vmatprep.subr.mxu0 0.0
    %1707 = vmatpush1.msra.mxu0 0.0
    %1708 = vmatprep.subr.mxu0 0.0
    %1709 = vmatpush1.msra.mxu0 0.0
    %1710 = vmatprep.subr.mxu0 0.0
    %1711 = vmatpush1.msra.mxu0 0.0
    %1712 = vmatprep.subr.mxu0 0.0
    %1713 = vmatpush1.msra.mxu0 0.0
    %1714 = vmatprep.mubr.f32.mxu0 0.0
    %v1715 = vand.u32 %v464, 4294901760
    %1716 = vmatmul.mubr.f32.gmra.mrb[0].mxu0 %v1715
    %v1717 = vpop.f32.mrb[0].mxu0
    %v1718 = vadd.f32 %v1592, %v1717
    %v1719 = vpop.f32.mrb[0].mxu0
    %v1720 = vadd.f32 %v1594, %v1719
    %1721 = vdwg.mxu0
    %v1722 = vand.u32 %v424, 4294901760
    %1723 = vmatprep.subr.mxu0 %v1722
    %v1724 = vand.u32 %v423, 4294901760
    %1725 = vmatpush1.msra.mxu0 %v1724
    %v1726 = vand.u32 %v428, 4294901760
    %1727 = vmatprep.subr.mxu0 %v1726
    %v1728 = vand.u32 %v427, 4294901760
    %1729 = vmatpush1.msra.mxu0 %v1728
    %v1730 = vand.u32 %v432, 4294901760
    %1731 = vmatprep.subr.mxu0 %v1730
    %v1732 = vand.u32 %v431, 4294901760
    %1733 = vmatpush1.msra.mxu0 %v1732
    %v1734 = vand.u32 %v436, 4294901760
    %1735 = vmatprep.subr.mxu0 %v1734
    %v1736 = vand.u32 %v435, 4294901760
    %1737 = vmatpush1.msra.mxu0 %v1736
    %v1738 = vand.u32 %v440, 4294901760
    %1739 = vmatprep.subr.mxu0 %v1738
    %v1740 = vand.u32 %v439, 4294901760
    %1741 = vmatpush1.msra.mxu0 %v1740
    %v1742 = vand.u32 %v444, 4294901760
    %1743 = vmatprep.subr.mxu0 %v1742
    %v1744 = vand.u32 %v443, 4294901760
    %1745 = vmatpush1.msra.mxu0 %v1744
    %v1746 = vand.u32 %v448, 4294901760
    %1747 = vmatprep.subr.mxu0 %v1746
    %v1748 = vand.u32 %v447, 4294901760
    %1749 = vmatpush1.msra.mxu0 %v1748
    %v1750 = vand.u32 %v452, 4294901760
    %1751 = vmatprep.subr.mxu0 %v1750
    %v1752 = vand.u32 %v451, 4294901760
    %1753 = vmatpush1.msra.mxu0 %v1752
    %v1754 = vand.u32 %v456, 4294901760
    %1755 = vmatprep.subr.mxu0 %v1754
    %v1756 = vand.u32 %v455, 4294901760
    %1757 = vmatpush1.msra.mxu0 %v1756
    %1758 = vmatprep.subr.mxu0 0.0
    %1759 = vmatpush1.msra.mxu0 0.0
    %1760 = vmatprep.subr.mxu0 0.0
    %1761 = vmatpush1.msra.mxu0 0.0
    %1762 = vmatprep.subr.mxu0 0.0
    %1763 = vmatpush1.msra.mxu0 0.0
    %1764 = vmatprep.subr.mxu0 0.0
    %1765 = vmatpush1.msra.mxu0 0.0
    %1766 = vmatprep.subr.mxu0 0.0
    %1767 = vmatpush1.msra.mxu0 0.0
    %1768 = vmatprep.subr.mxu0 0.0
    %1769 = vmatpush1.msra.mxu0 0.0
    %1770 = vmatprep.subr.mxu0 0.0
    %1771 = vmatpush1.msra.mxu0 0.0
    %1772 = vmatprep.subr.mxu0 0.0
    %1773 = vmatpush1.msra.mxu0 0.0
    %1774 = vmatprep.subr.mxu0 0.0
    %1775 = vmatpush1.msra.mxu0 0.0
    %1776 = vmatprep.subr.mxu0 0.0
    %1777 = vmatpush1.msra.mxu0 0.0
    %1778 = vmatprep.subr.mxu0 0.0
    %1779 = vmatpush1.msra.mxu0 0.0
    %1780 = vmatprep.subr.mxu0 0.0
    %1781 = vmatpush1.msra.mxu0 0.0
    %1782 = vmatprep.subr.mxu0 0.0
    %1783 = vmatpush1.msra.mxu0 0.0
    %1784 = vmatprep.subr.mxu0 0.0
    %1785 = vmatpush1.msra.mxu0 0.0
    %1786 = vmatprep.subr.mxu0 0.0
    %1787 = vmatpush1.msra.mxu0 0.0
    %1788 = vmatprep.subr.mxu0 0.0
    %1789 = vmatpush1.msra.mxu0 0.0
    %1790 = vmatprep.subr.mxu0 0.0
    %1791 = vmatpush1.msra.mxu0 0.0
    %1792 = vmatprep.subr.mxu0 0.0
    %1793 = vmatpush1.msra.mxu0 0.0
    %1794 = vmatprep.subr.mxu0 0.0
    %1795 = vmatpush1.msra.mxu0 0.0
    %1796 = vmatprep.subr.mxu0 0.0
    %1797 = vmatpush1.msra.mxu0 0.0
    %1798 = vmatprep.subr.mxu0 0.0
    %1799 = vmatpush1.msra.mxu0 0.0
    %1800 = vmatprep.subr.mxu0 0.0
    %1801 = vmatpush1.msra.mxu0 0.0
    %1802 = vmatprep.subr.mxu0 0.0
    %1803 = vmatpush1.msra.mxu0 0.0
    %1804 = vmatprep.mubr.f32.mxu0 0.0
    %v1805 = vand.u32 %v464, 4294901760
    %1806 = vmatmul.mubr.f32.gmra.mrb[0].mxu0 %v1805
    %v1807 = vpop.f32.mrb[0].mxu0
    %v1808 = vadd.f32 %v1718, %v1807
    %v1809 = vpop.f32.mrb[0].mxu0
    %v1810 = vadd.f32 %v1720, %v1809
    %1811 = vdwg.mxu0
    %1812 = vst [vmem:[#allocation10] sm:$0xff] %v1135
    %1813 = vst [vmem:[#allocation10 + $0x8] sm:$0xff] %v1137
    %s1814 = scalar_lea.vmem [#allocation10], 16
    %1815 = vst [vmem:[%s1814] sm:$0xff] %v1808
    %1816 = vst [vmem:[%s1814 + $0x8] sm:$0xff] %v1810
    // Predicated region
    $region34: #{tpu_custom_call.1} parent=1 // pred_check
      _
    $region35: #{tpu_custom_call.1} parent=1 // pred_check_branch
      %1818 = sbr.rel (0) target = $region37
    $region36: #{tpu_custom_call.1} parent=1 // pred_region
      %s1820 = ssub.s32 512, 512
      %1821 = vsyncadd [#allocation6], %s1820
      %s1822 = sshll.u32 [#allocation10], 4
      %s1823 = int_to_ptr.vmem [resolvable:$true] %s1822
      %1828 = dma.vmem_to_hbm [thread:$0]  %s1823, 512, %s5, [#allocation6], 256, 256, 16
    $region37: #{tpu_custom_call.1} parent=1 // pred_fallthru
      _
    // Predicated region
    $region38: #{tpu_custom_call.1} parent=1 // pred_check
      _
    $region39: #{tpu_custom_call.1} parent=1 // pred_check_branch
      %1830 = sbr.rel (0) target = $region41
    $region40: #{tpu_custom_call.1} parent=1 // pred_region
      %1831 = dma.done [#allocation6], 512
    $region41: #{tpu_custom_call.1} parent=1 // pred_fallthru
      _
    %1832 = vsyncpa [#allocation5], 1
    %1833 = vsyncpa [#allocation8], 1
    %1834 = vsyncpa [#allocation6], 1

</llo_original>
